<compile_context>
chip_gen: v7x
topology: tpu7x:2x2x1
jax: 0.10.0
libtpu: 0.0.40
codegen_flags: <defaults>
</compile_context>

<pallas_src>
import functools
import math

import numpy as np
import jax
import jax.numpy as jnp
from jax.experimental import pallas as pl
from jax.experimental.pallas import tpu as pltpu


def _layernorm(x, gamma, beta, eps=1e-6):
    mu = jnp.mean(x, axis=-1, keepdims=True)
    var = jnp.mean((x - mu) ** 2, axis=-1, keepdims=True)
    return (x - mu) * jax.lax.rsqrt(var + eps) * gamma + beta


def _block_compute(enc_ref, bias_ref, wq_ref, wk_ref, wv_ref, wo_ref,
                   g1_ref, b1_ref, w1_ref, bias1_ref, w2_ref, bias2_ref,
                   g2_ref, b2_ref, *, bt, s, exact_softmax):
    """Computes (out_rows, attn) for one flattened (bt*s, H) row tile."""
    xc = enc_ref[...]                       # (R, H) in compute dtype (f32/bf16)
    x = xc.astype(jnp.float32)              # f32 copy for residual / LayerNorm
    hdim = x.shape[-1]
    cdt = wq_ref.dtype                      # MXU-input dtype

    # ---- single-head self attention (1/sqrt(H) already folded into W_Q) ----
    q = jnp.dot(xc, wq_ref[...], preferred_element_type=jnp.float32)
    k = jnp.dot(xc, wk_ref[...], preferred_element_type=jnp.float32)
    v = jnp.dot(xc, wv_ref[...], preferred_element_type=jnp.float32)

    qb = q.reshape(bt, s, hdim).astype(cdt)
    kb = k.reshape(bt, s, hdim).astype(cdt)
    vb = v.reshape(bt, s, hdim).astype(cdt)

    scores = jnp.einsum("bqd,bkd->bqk", qb, kb,
                        preferred_element_type=jnp.float32)      # (bt, s, s)
    # bias block is (1, s, s) (shared) or (bt, s, s) (per-batch); broadcasts.
    scores = scores + bias_ref[...]

    m = jnp.max(scores, axis=-1, keepdims=True)
    e = jnp.exp(scores - m)
    denom = jnp.sum(e, axis=-1, keepdims=True)
    if exact_softmax:
        attn = e / denom                                         # exact
    else:
        attn = e * pl.reciprocal(denom, approx=True)             # EUP (fast)

    ctx = jnp.einsum("bqk,bkd->bqd", attn.astype(cdt), vb,
                     preferred_element_type=jnp.float32)         # (bt, s, H)
    ctx = ctx.reshape(bt * s, hdim)

    o = jnp.dot(ctx.astype(cdt), wo_ref[...],
                preferred_element_type=jnp.float32)
    # dropout = identity (eval); residual + LayerNorm(eps=1e-6)
    x1 = _layernorm(o + x, g1_ref[...], b1_ref[...])

    # ---- positionwise feed-forward ----
    h = jnp.dot(x1.astype(cdt), w1_ref[...],
                preferred_element_type=jnp.float32) + bias1_ref[...]
    h = jnp.maximum(h, 0.0)
    ff = jnp.dot(h.astype(cdt), w2_ref[...],
                 preferred_element_type=jnp.float32) + bias2_ref[...]
    out = _layernorm(ff + x1, g2_ref[...], b2_ref[...])
    return out, attn


def _make_kernel(bt, s, return_attn, exact_softmax):
    def kernel(enc_ref, bias_ref, wq_ref, wk_ref, wv_ref, wo_ref,
               g1_ref, b1_ref, w1_ref, bias1_ref, w2_ref, bias2_ref,
               g2_ref, b2_ref, *out_refs):
        out, attn = _block_compute(
            enc_ref, bias_ref, wq_ref, wk_ref, wv_ref, wo_ref,
            g1_ref, b1_ref, w1_ref, bias1_ref, w2_ref, bias2_ref,
            g2_ref, b2_ref, bt=bt, s=s, exact_softmax=exact_softmax)
        out_refs[0][...] = out.astype(out_refs[0].dtype)
        if return_attn:
            out_refs[1][...] = attn.astype(out_refs[1].dtype)
    return kernel


def _pick_batch_tile(B, S, H, *, attn_out=True, itemsize=4,
                     vmem_budget=24 << 20, target_rows=512):
    """Largest Bt dividing B with: >=2 grid steps when B>=2, sublane-clean
    rows (Bt*S % 8 == 0), and a per-step working set under vmem_budget."""
    def step_bytes(bt):
        rows = bt * S
        io = 2 * 2 * rows * H * 4                     # enc + out, double buf
        attn = (2 * bt * S * S * 4) if attn_out else 0
        temps = 4 * bt * S * S * 4                    # scores/e/attn live f32
        weights = 2 * 6 * H * H * itemsize            # resident, double buf
        return io + attn + temps + weights

    cap = max(1, min(target_rows // max(S, 1), B))
    if B >= 2:
        cap = min(cap, max(1, B // 2))                # keep >= 2 grid steps
    for bt in range(cap, 0, -1):
        if B % bt == 0 and (bt * S) % 8 == 0 and step_bytes(bt) <= vmem_budget:
            return bt
    # Fallback: single full-array step (always layout-legal).
    # TODO(synk): pad S to a multiple of 8 instead of this fallback.
    return B


def sasrec_block(enc, mask, params, *, compute_dtype=jnp.float32,
                 out_dtype=jnp.float32, return_attn=True):
    """enc: (B, S, H) f32.  mask: (B|1, 1, S, S), (B|1, S, S) or (S, S).

    Returns (out_enc (B,S,H), attn (B,1,S,S)) or just out_enc if
    return_attn=False.  compute_dtype=jnp.bfloat16 halves enc HBM traffic and
    feeds the MXU in bf16 (f32 accumulation, f32 softmax/LayerNorm math).
    """
    B, S, H = enc.shape
    inv_sqrt_h = 1.0 / math.sqrt(H)

    # ---- one-time parameter prep (not on the hot path) ----
    wq_t = (params["wq"] * inv_sqrt_h).T.astype(compute_dtype)  # fold 1/sqrt(H)
    wk_t = params["wk"].T.astype(compute_dtype)
    wv_t = params["wv"].T.astype(compute_dtype)
    wo_t = params["wo"].T.astype(compute_dtype)
    w1_t = params["w1"].T.astype(compute_dtype)
    w2_t = params["w2"].T.astype(compute_dtype)
    g1 = params["ln1_gamma"].reshape(1, H).astype(jnp.float32)
    b1 = params["ln1_beta"].reshape(1, H).astype(jnp.float32)
    bias1 = params["b1"].reshape(1, H).astype(jnp.float32)
    bias2 = params["b2"].reshape(1, H).astype(jnp.float32)
    g2 = params["ln2_gamma"].reshape(1, H).astype(jnp.float32)
    b2 = params["ln2_beta"].reshape(1, H).astype(jnp.float32)

    # ---- mask -> additive bias (baked once; single VPU add in kernel) ----
    mask = jnp.asarray(mask)
    if mask.ndim == 4:
        mask3 = mask[:, 0]
    elif mask.ndim == 3:
        mask3 = mask
    else:
        mask3 = mask[None]
    bias3 = jnp.where(mask3 == 0, -1000000000.0, 0.0).astype(jnp.float32)
    shared_mask = bias3.shape[0] == 1

    item = jnp.dtype(compute_dtype).itemsize
    bt = _pick_batch_tile(B, S, H, attn_out=return_attn, itemsize=item)
    rows = bt * S
    grid = (B // bt,)

    # enc I/O in compute dtype (halves HBM read when bf16); free reshape.
    enc_flat = enc.reshape(B * S, H).astype(compute_dtype)

    if shared_mask:
        mask_spec = pl.BlockSpec((1, S, S), lambda i: (0, 0, 0))
    else:
        mask_spec = pl.BlockSpec((bt, S, S), lambda i: (i, 0, 0))

    # Constant index_maps -> weights / vectors stay resident across steps.
    wspec = pl.BlockSpec((H, H), lambda i: (0, 0))
    vspec = pl.BlockSpec((1, H), lambda i: (0, 0))

    in_specs = [
        pl.BlockSpec((rows, H), lambda i: (i, 0)),   # enc rows
        mask_spec,                                   # additive bias
        wspec, wspec, wspec, wspec,                  # Wq, Wk, Wv, Wo
        vspec, vspec,                                # ln1 gamma / beta
        wspec, vspec,                                # W1, b1
        wspec, vspec,                                # W2, b2
        vspec, vspec,                                # ln2 gamma / beta
    ]

    kernel = _make_kernel(bt, S, return_attn, exact_softmax=return_attn)
    if return_attn:
        out_shape = (jax.ShapeDtypeStruct((B * S, H), out_dtype),
                     jax.ShapeDtypeStruct((B, S, S), jnp.float32))
        out_specs = (pl.BlockSpec((rows, H), lambda i: (i, 0)),
                     pl.BlockSpec((bt, S, S), lambda i: (i, 0, 0)))
    else:
        out_shape = jax.ShapeDtypeStruct((B * S, H), out_dtype)
        out_specs = pl.BlockSpec((rows, H), lambda i: (i, 0))

    # Scheduling hint for XLA around the custom call.
    flops = int(2 * B * S * (6 * H * H + 2 * S * H))
    bytes_accessed = int(
        B * S * H * item                               # enc read
        + B * S * H * jnp.dtype(out_dtype).itemsize    # out write
        + bias3.size * 4                               # mask bias
        + 6 * H * H * item + 6 * H * 4                 # weights / vectors
        + (B * S * S * 4 if return_attn else 0))       # attn writeback
    cost = pl.CostEstimate(flops=flops, transcendentals=int(B * S * S),
                           bytes_accessed=bytes_accessed)

    result = pl.pallas_call(
        kernel,
        out_shape=out_shape,
        grid_spec=pltpu.PrefetchScalarGridSpec(
            num_scalar_prefetch=0,
            grid=grid,
            in_specs=in_specs,
            out_specs=out_specs,
        ),
        compiler_params=pltpu.CompilerParams(
            dimension_semantics=("parallel",)),
        cost_estimate=cost,
    )(enc_flat, bias3, wq_t, wk_t, wv_t, wo_t,
      g1, b1, w1_t, bias1, w2_t, bias2, g2, b2)

    if return_attn:
        out_flat, attn = result
        return out_flat.reshape(B, S, H), attn[:, None]   # (B, 1, S, S)
    return result.reshape(B, S, H)


def sasrec_block_ref(enc, mask, params):
    """Pure-JAX reference mirroring the PyTorch forward (eval mode)."""
    H = enc.shape[-1]
    mask = jnp.asarray(mask)
    q = enc @ params["wq"].T
    k = enc @ params["wk"].T
    v = enc @ params["wv"].T
    scores = jnp.einsum("bsh,bth->bst", q, k) / math.sqrt(H)
    scores = jnp.where(mask[:, 0] == 0, -1000000000.0, scores)
    attn = jax.nn.softmax(scores, axis=-1)
    ctx = jnp.einsum("bst,bth->bsh", attn, v)
    o = ctx @ params["wo"].T

    def ln(x, g, b):
        mu = jnp.mean(x, -1, keepdims=True)
        var = jnp.mean((x - mu) ** 2, -1, keepdims=True)
        return (x - mu) / jnp.sqrt(var + 1e-6) * g + b

    x1 = ln(o + enc, params["ln1_gamma"], params["ln1_beta"])
    h = jnp.maximum(x1 @ params["w1"].T + params["b1"], 0.0)
    ff = h @ params["w2"].T + params["b2"]
    out = ln(ff + x1, params["ln2_gamma"], params["ln2_beta"])
    return out, attn[:, None]


if __name__ == "__main__":
    B, S, H = 2, 8, 32  # num_heads = 1 (see note above)

    key = jax.random.PRNGKey(0)
    ks = jax.random.split(key, 10)
    scale = 1.0 / math.sqrt(H)
    params = {
        "wq": jax.random.normal(ks[0], (H, H), jnp.float32) * scale,
        "wk": jax.random.normal(ks[1], (H, H), jnp.float32) * scale,
        "wv": jax.random.normal(ks[2], (H, H), jnp.float32) * scale,
        "wo": jax.random.normal(ks[3], (H, H), jnp.float32) * scale,
        "ln1_gamma": jnp.ones((H,), jnp.float32),
        "ln1_beta": jnp.zeros((H,), jnp.float32),
        "w1": jax.random.normal(ks[4], (H, H), jnp.float32) * scale,
        "b1": jax.random.normal(ks[5], (H,), jnp.float32) * 0.01,
        "w2": jax.random.normal(ks[6], (H, H), jnp.float32) * scale,
        "b2": jax.random.normal(ks[7], (H,), jnp.float32) * 0.01,
        "ln2_gamma": jnp.ones((H,), jnp.float32),
        "ln2_beta": jnp.zeros((H,), jnp.float32),
    }

    enc = jax.random.normal(ks[8], (B, S, H), jnp.float32)
    # shared causal mask (1 = attend, 0 = masked) passed un-broadcast: (1,1,S,S)
    mask = jnp.tril(jnp.ones((S, S), jnp.float32))[None, None]

    out_enc, attn = sasrec_block(enc, mask, params)
    jax.block_until_ready((out_enc, attn))

    ref_out, ref_attn = sasrec_block_ref(enc, mask, params)
    np.testing.assert_allclose(np.asarray(out_enc), np.asarray(ref_out),
                               rtol=1e-3, atol=1e-3)
    np.testing.assert_allclose(np.asarray(attn), np.asarray(ref_attn),
                               rtol=1e-3, atol=1e-3)

    # bf16-MXU / bf16-I/O / no-attn inference configuration (perf path on
    # v5e/v6e/v7x) smoke run -- numbers intentionally not compared at f32 tol.
    out_bf16 = sasrec_block(enc, mask, params,
                            compute_dtype=jnp.bfloat16,
                            out_dtype=jnp.bfloat16,
                            return_attn=False)
    jax.block_until_ready(out_bf16)

    print("KERNEL_OK")
</pallas_src>

<mosaic_0001>
module attributes {stable_mosaic.version = 11 : i64} {
  func.func @kernel(%arg0: i32, %arg1: memref<8x32xf32, #tpu.memory_space<vmem>>, %arg2: memref<1x8x8xf32, #tpu.memory_space<vmem>>, %arg3: memref<32x32xf32, #tpu.memory_space<vmem>>, %arg4: memref<32x32xf32, #tpu.memory_space<vmem>>, %arg5: memref<32x32xf32, #tpu.memory_space<vmem>>, %arg6: memref<32x32xf32, #tpu.memory_space<vmem>>, %arg7: memref<1x32xf32, #tpu.memory_space<vmem>>, %arg8: memref<1x32xf32, #tpu.memory_space<vmem>>, %arg9: memref<32x32xf32, #tpu.memory_space<vmem>>, %arg10: memref<1x32xf32, #tpu.memory_space<vmem>>, %arg11: memref<32x32xf32, #tpu.memory_space<vmem>>, %arg12: memref<1x32xf32, #tpu.memory_space<vmem>>, %arg13: memref<1x32xf32, #tpu.memory_space<vmem>>, %arg14: memref<1x32xf32, #tpu.memory_space<vmem>>, %arg15: memref<8x32xf32, #tpu.memory_space<vmem>>, %arg16: memref<1x8x8xf32, #tpu.memory_space<vmem>>) attributes {dimension_semantics = [#tpu.dimension_semantics<parallel>], iteration_bounds = array<i64: 2>, scalar_prefetch = 0 : i64, scratch_operands = 0 : i64, tpu.core_type = #tpu.core_type<tc>, window_params = [{transform_indices = @transform_0, window_bounds = array<i64: 8, 32>}, {pipeline_mode = #tpu.pipeline_mode<synchronous>, transform_indices = @transform_1, window_bounds = array<i64: 1, 8, 8>}, {pipeline_mode = #tpu.pipeline_mode<synchronous>, transform_indices = @transform_2, window_bounds = array<i64: 32, 32>}, {pipeline_mode = #tpu.pipeline_mode<synchronous>, transform_indices = @transform_3, window_bounds = array<i64: 32, 32>}, {pipeline_mode = #tpu.pipeline_mode<synchronous>, transform_indices = @transform_4, window_bounds = array<i64: 32, 32>}, {pipeline_mode = #tpu.pipeline_mode<synchronous>, transform_indices = @transform_5, window_bounds = array<i64: 32, 32>}, {pipeline_mode = #tpu.pipeline_mode<synchronous>, transform_indices = @transform_6, window_bounds = array<i64: 1, 32>}, {pipeline_mode = #tpu.pipeline_mode<synchronous>, transform_indices = @transform_7, window_bounds = array<i64: 1, 32>}, {pipeline_mode = #tpu.pipeline_mode<synchronous>, transform_indices = @transform_8, window_bounds = array<i64: 32, 32>}, {pipeline_mode = #tpu.pipeline_mode<synchronous>, transform_indices = @transform_9, window_bounds = array<i64: 1, 32>}, {pipeline_mode = #tpu.pipeline_mode<synchronous>, transform_indices = @transform_10, window_bounds = array<i64: 32, 32>}, {pipeline_mode = #tpu.pipeline_mode<synchronous>, transform_indices = @transform_11, window_bounds = array<i64: 1, 32>}, {pipeline_mode = #tpu.pipeline_mode<synchronous>, transform_indices = @transform_12, window_bounds = array<i64: 1, 32>}, {pipeline_mode = #tpu.pipeline_mode<synchronous>, transform_indices = @transform_13, window_bounds = array<i64: 1, 32>}, {transform_indices = @transform_14, window_bounds = array<i64: 8, 32>}, {transform_indices = @transform_15, window_bounds = array<i64: 1, 8, 8>}]} {
    %c0 = arith.constant 0 : index
    %c0_0 = arith.constant 0 : index
    %0 = vector.load %arg1[%c0, %c0_0] : memref<8x32xf32, #tpu.memory_space<vmem>>, vector<8x32xf32>
    %c0_1 = arith.constant 0 : index
    %c0_2 = arith.constant 0 : index
    %1 = vector.load %arg3[%c0_1, %c0_2] : memref<32x32xf32, #tpu.memory_space<vmem>>, vector<32x32xf32>
    %cst = arith.constant dense<0.000000e+00> : vector<8x32xf32>
    %2 = tpu.matmul %0, %1, %cst {dimension_numbers = #tpu.dot_dimension_numbers<[1], [0], [0], [1], [0, 0, 1, 1], [], []>} : vector<8x32xf32>, vector<32x32xf32>, vector<8x32xf32> -> vector<8x32xf32>
    %c0_3 = arith.constant 0 : index
    %c0_4 = arith.constant 0 : index
    %3 = vector.load %arg4[%c0_3, %c0_4] : memref<32x32xf32, #tpu.memory_space<vmem>>, vector<32x32xf32>
    %cst_5 = arith.constant dense<0.000000e+00> : vector<8x32xf32>
    %4 = tpu.matmul %0, %3, %cst_5 {dimension_numbers = #tpu.dot_dimension_numbers<[1], [0], [0], [1], [0, 0, 1, 1], [], []>} : vector<8x32xf32>, vector<32x32xf32>, vector<8x32xf32> -> vector<8x32xf32>
    %c0_6 = arith.constant 0 : index
    %c0_7 = arith.constant 0 : index
    %5 = vector.load %arg5[%c0_6, %c0_7] : memref<32x32xf32, #tpu.memory_space<vmem>>, vector<32x32xf32>
    %cst_8 = arith.constant dense<0.000000e+00> : vector<8x32xf32>
    %6 = tpu.matmul %0, %5, %cst_8 {dimension_numbers = #tpu.dot_dimension_numbers<[1], [0], [0], [1], [0, 0, 1, 1], [], []>} : vector<8x32xf32>, vector<32x32xf32>, vector<8x32xf32> -> vector<8x32xf32>
    %7 = vector.shape_cast %2 : vector<8x32xf32> to vector<1x8x32xf32>
    %8 = vector.shape_cast %4 : vector<8x32xf32> to vector<1x8x32xf32>
    %9 = vector.shape_cast %6 : vector<8x32xf32> to vector<1x8x32xf32>
    "tpu.trace_start"() <{level = 10 : i32, message = "bqd,bkd->bqk"}> : () -> ()
    %cst_9 = arith.constant dense<0.000000e+00> : vector<1x8x8xf32>
    %10 = tpu.matmul %7, %8, %cst_9 {dimension_numbers = #tpu.dot_dimension_numbers<[2], [2], [1], [1], [0, 0, 0, 1, 1, 1], [0], [0]>} : vector<1x8x32xf32>, vector<1x8x32xf32>, vector<1x8x8xf32> -> vector<1x8x8xf32>
    "tpu.trace_stop"() : () -> ()
    %c0_10 = arith.constant 0 : index
    %c0_11 = arith.constant 0 : index
    %c0_12 = arith.constant 0 : index
    %11 = vector.load %arg2[%c0_10, %c0_11, %c0_12] : memref<1x8x8xf32, #tpu.memory_space<vmem>>, vector<1x8x8xf32>
    %12 = arith.addf %10, %11 : vector<1x8x8xf32>
    %cst_13 = arith.constant dense<0xFF800000> : vector<1x8xf32>
    %13 = vector.multi_reduction <maximumf>, %12, %cst_13 [2] : vector<1x8x8xf32> to vector<1x8xf32>
    %14 = vector.shape_cast %13 : vector<1x8xf32> to vector<1x8x1xf32>
    %15 = vector.broadcast %14 : vector<1x8x1xf32> to vector<1x8x8xf32>
    %16 = arith.subf %12, %15 : vector<1x8x8xf32>
    %17 = math.exp %16 : vector<1x8x8xf32>
    %cst_14 = arith.constant dense<0.000000e+00> : vector<1x8xf32>
    %18 = vector.multi_reduction <add>, %17, %cst_14 [2] : vector<1x8x8xf32> to vector<1x8xf32>
    %19 = vector.shape_cast %18 : vector<1x8xf32> to vector<1x8x1xf32>
    %20 = vector.broadcast %19 : vector<1x8x1xf32> to vector<1x8x8xf32>
    %21 = arith.divf %17, %20 : vector<1x8x8xf32>
    "tpu.trace_start"() <{level = 10 : i32, message = "bqk,bkd->bqd"}> : () -> ()
    %cst_15 = arith.constant dense<0.000000e+00> : vector<1x8x32xf32>
    %22 = tpu.matmul %21, %9, %cst_15 {dimension_numbers = #tpu.dot_dimension_numbers<[2], [1], [1], [2], [0, 0, 0, 1, 1, 2], [0], [0]>} : vector<1x8x8xf32>, vector<1x8x32xf32>, vector<1x8x32xf32> -> vector<1x8x32xf32>
    "tpu.trace_stop"() : () -> ()
    %23 = vector.shape_cast %22 : vector<1x8x32xf32> to vector<8x32xf32>
    %c0_16 = arith.constant 0 : index
    %c0_17 = arith.constant 0 : index
    %24 = vector.load %arg6[%c0_16, %c0_17] : memref<32x32xf32, #tpu.memory_space<vmem>>, vector<32x32xf32>
    %cst_18 = arith.constant dense<0.000000e+00> : vector<8x32xf32>
    %25 = tpu.matmul %23, %24, %cst_18 {dimension_numbers = #tpu.dot_dimension_numbers<[1], [0], [0], [1], [0, 0, 1, 1], [], []>} : vector<8x32xf32>, vector<32x32xf32>, vector<8x32xf32> -> vector<8x32xf32>
    %26 = arith.addf %25, %0 : vector<8x32xf32>
    %c0_19 = arith.constant 0 : index
    %c0_20 = arith.constant 0 : index
    %27 = vector.load %arg7[%c0_19, %c0_20] : memref<1x32xf32, #tpu.memory_space<vmem>>, vector<1x32xf32>
    %c0_21 = arith.constant 0 : index
    %c0_22 = arith.constant 0 : index
    %28 = vector.load %arg8[%c0_21, %c0_22] : memref<1x32xf32, #tpu.memory_space<vmem>>, vector<1x32xf32>
    %cst_23 = arith.constant dense<0.000000e+00> : vector<8xf32>
    %29 = vector.multi_reduction <add>, %26, %cst_23 [1] : vector<8x32xf32> to vector<8xf32>
    %30 = vector.shape_cast %29 : vector<8xf32> to vector<8x1xf32>
    %cst_24 = arith.constant 3.200000e+01 : f32
    %31 = vector.broadcast %cst_24 : f32 to vector<8x1xf32>
    %32 = arith.divf %30, %31 : vector<8x1xf32>
    %33 = vector.broadcast %32 : vector<8x1xf32> to vector<8x32xf32>
    %34 = arith.subf %26, %33 : vector<8x32xf32>
    %35 = arith.mulf %34, %34 : vector<8x32xf32>
    %cst_25 = arith.constant dense<0.000000e+00> : vector<8xf32>
    %36 = vector.multi_reduction <add>, %35, %cst_25 [1] : vector<8x32xf32> to vector<8xf32>
    %37 = vector.shape_cast %36 : vector<8xf32> to vector<8x1xf32>
    %cst_26 = arith.constant 3.200000e+01 : f32
    %38 = vector.broadcast %cst_26 : f32 to vector<8x1xf32>
    %39 = arith.divf %37, %38 : vector<8x1xf32>
    %40 = vector.broadcast %32 : vector<8x1xf32> to vector<8x32xf32>
    %41 = arith.subf %26, %40 : vector<8x32xf32>
    %cst_27 = arith.constant 9.99999997E-7 : f32
    %42 = vector.broadcast %cst_27 : f32 to vector<8x1xf32>
    %43 = arith.addf %39, %42 : vector<8x1xf32>
    %44 = math.rsqrt %43 : vector<8x1xf32>
    %45 = vector.broadcast %44 : vector<8x1xf32> to vector<8x32xf32>
    %46 = arith.mulf %41, %45 : vector<8x32xf32>
    %47 = vector.broadcast %27 : vector<1x32xf32> to vector<8x32xf32>
    %48 = arith.mulf %46, %47 : vector<8x32xf32>
    %49 = vector.broadcast %28 : vector<1x32xf32> to vector<8x32xf32>
    %50 = arith.addf %48, %49 : vector<8x32xf32>
    %c0_28 = arith.constant 0 : index
    %c0_29 = arith.constant 0 : index
    %51 = vector.load %arg9[%c0_28, %c0_29] : memref<32x32xf32, #tpu.memory_space<vmem>>, vector<32x32xf32>
    %cst_30 = arith.constant dense<0.000000e+00> : vector<8x32xf32>
    %52 = tpu.matmul %50, %51, %cst_30 {dimension_numbers = #tpu.dot_dimension_numbers<[1], [0], [0], [1], [0, 0, 1, 1], [], []>} : vector<8x32xf32>, vector<32x32xf32>, vector<8x32xf32> -> vector<8x32xf32>
    %c0_31 = arith.constant 0 : index
    %c0_32 = arith.constant 0 : index
    %53 = vector.load %arg10[%c0_31, %c0_32] : memref<1x32xf32, #tpu.memory_space<vmem>>, vector<1x32xf32>
    %54 = vector.broadcast %53 : vector<1x32xf32> to vector<8x32xf32>
    %55 = arith.addf %52, %54 : vector<8x32xf32>
    %cst_33 = arith.constant 0.000000e+00 : f32
    %56 = vector.broadcast %cst_33 : f32 to vector<8x32xf32>
    %57 = arith.maximumf %55, %56 : vector<8x32xf32>
    %c0_34 = arith.constant 0 : index
    %c0_35 = arith.constant 0 : index
    %58 = vector.load %arg11[%c0_34, %c0_35] : memref<32x32xf32, #tpu.memory_space<vmem>>, vector<32x32xf32>
    %cst_36 = arith.constant dense<0.000000e+00> : vector<8x32xf32>
    %59 = tpu.matmul %57, %58, %cst_36 {dimension_numbers = #tpu.dot_dimension_numbers<[1], [0], [0], [1], [0, 0, 1, 1], [], []>} : vector<8x32xf32>, vector<32x32xf32>, vector<8x32xf32> -> vector<8x32xf32>
    %c0_37 = arith.constant 0 : index
    %c0_38 = arith.constant 0 : index
    %60 = vector.load %arg12[%c0_37, %c0_38] : memref<1x32xf32, #tpu.memory_space<vmem>>, vector<1x32xf32>
    %61 = vector.broadcast %60 : vector<1x32xf32> to vector<8x32xf32>
    %62 = arith.addf %59, %61 : vector<8x32xf32>
    %63 = arith.addf %62, %50 : vector<8x32xf32>
    %c0_39 = arith.constant 0 : index
    %c0_40 = arith.constant 0 : index
    %64 = vector.load %arg13[%c0_39, %c0_40] : memref<1x32xf32, #tpu.memory_space<vmem>>, vector<1x32xf32>
    %c0_41 = arith.constant 0 : index
    %c0_42 = arith.constant 0 : index
    %65 = vector.load %arg14[%c0_41, %c0_42] : memref<1x32xf32, #tpu.memory_space<vmem>>, vector<1x32xf32>
    %cst_43 = arith.constant dense<0.000000e+00> : vector<8xf32>
    %66 = vector.multi_reduction <add>, %63, %cst_43 [1] : vector<8x32xf32> to vector<8xf32>
    %67 = vector.shape_cast %66 : vector<8xf32> to vector<8x1xf32>
    %cst_44 = arith.constant 3.200000e+01 : f32
    %68 = vector.broadcast %cst_44 : f32 to vector<8x1xf32>
    %69 = arith.divf %67, %68 : vector<8x1xf32>
    %70 = vector.broadcast %69 : vector<8x1xf32> to vector<8x32xf32>
    %71 = arith.subf %63, %70 : vector<8x32xf32>
    %72 = arith.mulf %71, %71 : vector<8x32xf32>
    %cst_45 = arith.constant dense<0.000000e+00> : vector<8xf32>
    %73 = vector.multi_reduction <add>, %72, %cst_45 [1] : vector<8x32xf32> to vector<8xf32>
    %74 = vector.shape_cast %73 : vector<8xf32> to vector<8x1xf32>
    %cst_46 = arith.constant 3.200000e+01 : f32
    %75 = vector.broadcast %cst_46 : f32 to vector<8x1xf32>
    %76 = arith.divf %74, %75 : vector<8x1xf32>
    %77 = vector.broadcast %69 : vector<8x1xf32> to vector<8x32xf32>
    %78 = arith.subf %63, %77 : vector<8x32xf32>
    %cst_47 = arith.constant 9.99999997E-7 : f32
    %79 = vector.broadcast %cst_47 : f32 to vector<8x1xf32>
    %80 = arith.addf %76, %79 : vector<8x1xf32>
    %81 = math.rsqrt %80 : vector<8x1xf32>
    %82 = vector.broadcast %81 : vector<8x1xf32> to vector<8x32xf32>
    %83 = arith.mulf %78, %82 : vector<8x32xf32>
    %84 = vector.broadcast %64 : vector<1x32xf32> to vector<8x32xf32>
    %85 = arith.mulf %83, %84 : vector<8x32xf32>
    %86 = vector.broadcast %65 : vector<1x32xf32> to vector<8x32xf32>
    %87 = arith.addf %85, %86 : vector<8x32xf32>
    %c0_48 = arith.constant 0 : index
    %c0_49 = arith.constant 0 : index
    %88 = vector.load %arg15[%c0_48, %c0_49] : memref<8x32xf32, #tpu.memory_space<vmem>>, vector<8x32xf32>
    tpu.vector_store %arg15[%c0_48, %c0_49], %87 {strides = array<i32>} : memref<8x32xf32, #tpu.memory_space<vmem>>, vector<8x32xf32>,
    %c0_50 = arith.constant 0 : index
    %c0_51 = arith.constant 0 : index
    %c0_52 = arith.constant 0 : index
    %89 = vector.load %arg16[%c0_50, %c0_51, %c0_52] : memref<1x8x8xf32, #tpu.memory_space<vmem>>, vector<1x8x8xf32>
    tpu.vector_store %arg16[%c0_50, %c0_51, %c0_52], %21 {strides = array<i32>} : memref<1x8x8xf32, #tpu.memory_space<vmem>>, vector<1x8x8xf32>,
    return
  }
  func.func @transform_0(%arg0: i32) -> (i32, i32) {
    %c0_i32 = arith.constant 0 : i32
    %c0_i32_0 = arith.constant 0 : i32
    return %arg0, %c0_i32 : i32, i32
  }
  func.func @transform_1(%arg0: i32) -> (i32, i32, i32) {
    %c0_i32 = arith.constant 0 : i32
    %c0_i32_0 = arith.constant 0 : i32
    %c0_i32_1 = arith.constant 0 : i32
    %c0_i32_2 = arith.constant 0 : i32
    return %c0_i32, %c0_i32_0, %c0_i32_1 : i32, i32, i32
  }
  func.func @transform_2(%arg0: i32) -> (i32, i32) {
    %c0_i32 = arith.constant 0 : i32
    %c0_i32_0 = arith.constant 0 : i32
    %c0_i32_1 = arith.constant 0 : i32
    return %c0_i32, %c0_i32_0 : i32, i32
  }
  func.func @transform_3(%arg0: i32) -> (i32, i32) {
    %c0_i32 = arith.constant 0 : i32
    %c0_i32_0 = arith.constant 0 : i32
    %c0_i32_1 = arith.constant 0 : i32
    return %c0_i32, %c0_i32_0 : i32, i32
  }
  func.func @transform_4(%arg0: i32) -> (i32, i32) {
    %c0_i32 = arith.constant 0 : i32
    %c0_i32_0 = arith.constant 0 : i32
    %c0_i32_1 = arith.constant 0 : i32
    return %c0_i32, %c0_i32_0 : i32, i32
  }
  func.func @transform_5(%arg0: i32) -> (i32, i32) {
    %c0_i32 = arith.constant 0 : i32
    %c0_i32_0 = arith.constant 0 : i32
    %c0_i32_1 = arith.constant 0 : i32
    return %c0_i32, %c0_i32_0 : i32, i32
  }
  func.func @transform_6(%arg0: i32) -> (i32, i32) {
    %c0_i32 = arith.constant 0 : i32
    %c0_i32_0 = arith.constant 0 : i32
    %c0_i32_1 = arith.constant 0 : i32
    return %c0_i32, %c0_i32_0 : i32, i32
  }
  func.func @transform_7(%arg0: i32) -> (i32, i32) {
    %c0_i32 = arith.constant 0 : i32
    %c0_i32_0 = arith.constant 0 : i32
    %c0_i32_1 = arith.constant 0 : i32
    return %c0_i32, %c0_i32_0 : i32, i32
  }
  func.func @transform_8(%arg0: i32) -> (i32, i32) {
    %c0_i32 = arith.constant 0 : i32
    %c0_i32_0 = arith.constant 0 : i32
    %c0_i32_1 = arith.constant 0 : i32
    return %c0_i32, %c0_i32_0 : i32, i32
  }
  func.func @transform_9(%arg0: i32) -> (i32, i32) {
    %c0_i32 = arith.constant 0 : i32
    %c0_i32_0 = arith.constant 0 : i32
    %c0_i32_1 = arith.constant 0 : i32
    return %c0_i32, %c0_i32_0 : i32, i32
  }
  func.func @transform_10(%arg0: i32) -> (i32, i32) {
    %c0_i32 = arith.constant 0 : i32
    %c0_i32_0 = arith.constant 0 : i32
    %c0_i32_1 = arith.constant 0 : i32
    return %c0_i32, %c0_i32_0 : i32, i32
  }
  func.func @transform_11(%arg0: i32) -> (i32, i32) {
    %c0_i32 = arith.constant 0 : i32
    %c0_i32_0 = arith.constant 0 : i32
    %c0_i32_1 = arith.constant 0 : i32
    return %c0_i32, %c0_i32_0 : i32, i32
  }
  func.func @transform_12(%arg0: i32) -> (i32, i32) {
    %c0_i32 = arith.constant 0 : i32
    %c0_i32_0 = arith.constant 0 : i32
    %c0_i32_1 = arith.constant 0 : i32
    return %c0_i32, %c0_i32_0 : i32, i32
  }
  func.func @transform_13(%arg0: i32) -> (i32, i32) {
    %c0_i32 = arith.constant 0 : i32
    %c0_i32_0 = arith.constant 0 : i32
    %c0_i32_1 = arith.constant 0 : i32
    return %c0_i32, %c0_i32_0 : i32, i32
  }
  func.func @transform_14(%arg0: i32) -> (i32, i32) {
    %c0_i32 = arith.constant 0 : i32
    %c0_i32_0 = arith.constant 0 : i32
    return %arg0, %c0_i32 : i32, i32
  }
  func.func @transform_15(%arg0: i32) -> (i32, i32, i32) {
    %c0_i32 = arith.constant 0 : i32
    %c0_i32_0 = arith.constant 0 : i32
    %c0_i32_1 = arith.constant 0 : i32
    return %arg0, %c0_i32, %c0_i32_0 : i32, i32, i32
  }
}

</mosaic_0001>

<llo_original>
// kernel: tpu_custom_call.1
$region0: #{tpu_custom_call.1}
  #allocation0 [shape = 'u32[]', space=smem, size = 0x4, offset = 0x4, fixed_abs, tag = 'smem constant byte address 0x4 - core index']
  #allocation1 [shape = 'u32[144,128]{1,0:T(1,128)}', space=vmem, size = 0x12000, scoped, tag = 'internal scratch']
  %s0 = inlined_call_operand.hbm [shape: f32[16,32], index: 0, kind: input, shape index: {}]
  %s1 = inlined_call_operand.hbm [shape: f32[1,8,8], index: 1, kind: input, shape index: {}]
  %s2 = inlined_call_operand.hbm [shape: f32[32,32], index: 2, kind: input, shape index: {}]
  %s3 = inlined_call_operand.hbm [shape: f32[32,32], index: 3, kind: input, shape index: {}]
  %s4 = inlined_call_operand.hbm [shape: f32[32,32], index: 4, kind: input, shape index: {}]
  %s5 = inlined_call_operand.hbm [shape: f32[32,32], index: 5, kind: input, shape index: {}]
  %s6 = inlined_call_operand.vmem [shape: f32[1,32], index: 6, kind: input, shape index: {}]
  %s7 = inlined_call_operand.vmem [shape: f32[1,32], index: 7, kind: input, shape index: {}]
  %s8 = inlined_call_operand.hbm [shape: f32[32,32], index: 8, kind: input, shape index: {}]
  %s9 = inlined_call_operand.vmem [shape: f32[1,32], index: 9, kind: input, shape index: {}]
  %s10 = inlined_call_operand.vmem [shape: f32[32,32], index: 10, kind: input, shape index: {}]
  %s11 = inlined_call_operand.vmem [shape: f32[1,32], index: 11, kind: input, shape index: {}]
  %s12 = inlined_call_operand.vmem [shape: f32[1,32], index: 12, kind: input, shape index: {}]
  %s13 = inlined_call_operand.vmem [shape: f32[1,32], index: 13, kind: input, shape index: {}]
  %s14 = inlined_call_operand.hbm [shape: f32[16,32], index: 14, kind: output, shape index: {0}]
  %s15 = inlined_call_operand.hbm [shape: f32[2,8,8], index: 15, kind: output, shape index: {1}]
  %16 = xla_tuple %s14, %s15
  %s17 = sld [smem:[#allocation0]]
  $region125: #{tpu_custom_call.1} parent=0
    _
  %s19 = ssub.s32 1, %s17
  %s20 = scalar_select 0, %s19, %s17
  $region1: #{tpu_custom_call.1} parent=0
    #allocation2 [shape = 'u8[8192]{0}', space=vmem, size = 0x2000, scoped, tag = 'input window, operand 0']
    #allocation3 [shape = 's32[2]{0}', space=sflag, size = 0x8, scoped, tag = 'scoped memory for tpu_custom_call.1']
    #allocation4 [shape = 's32[2]{0}', space=sflag, size = 0x8, scoped, tag = 'scoped memory for tpu_custom_call.1']
    #allocation5 [shape = 'u8[4096]{0}', space=vmem, size = 0x1000, scoped, tag = 'input window, operand 1, single buffered']
    #allocation6 [shape = 's32[1]{0}', space=sflag, size = 0x4, scoped, tag = 'scoped memory for tpu_custom_call.1']
    #allocation7 [shape = 'u8[16384]{0}', space=vmem, size = 0x4000, scoped, tag = 'input window, operand 2, single buffered']
    #allocation8 [shape = 'u8[16384]{0}', space=vmem, size = 0x4000, scoped, tag = 'input window, operand 3, single buffered']
    #allocation9 [shape = 's32[1]{0}', space=sflag, size = 0x4, scoped, tag = 'scoped memory for tpu_custom_call.1']
    #allocation10 [shape = 'u8[16384]{0}', space=vmem, size = 0x4000, scoped, tag = 'input window, operand 4, single buffered']
    #allocation11 [shape = 'u8[16384]{0}', space=vmem, size = 0x4000, scoped, tag = 'input window, operand 5, single buffered']
    #allocation12 [shape = 's32[1]{0}', space=sflag, size = 0x4, scoped, tag = 'scoped memory for tpu_custom_call.1']
    #allocation13 [shape = 'u8[16384]{0}', space=vmem, size = 0x4000, scoped, tag = 'input window, operand 8, single buffered']
    #allocation14 [shape = 'u8[8192]{0}', space=vmem, size = 0x2000, scoped, tag = 'output window, operand 0']
    #allocation15 [shape = 'u8[8192]{0}', space=vmem, size = 0x2000, scoped, tag = 'output window, operand 1']
    #allocation16 [shape = 's32[2]{0}', space=sflag, size = 0x8, scoped, tag = 'scoped memory for tpu_custom_call.1']
    %21 = vsyncpa [#allocation3], 0
    %s22 = scalar_lea.sflag [#allocation3], 1
    %23 = vsyncpa %s22, 0
    %24 = vsyncpa [#allocation6], 0
    %25 = vsyncpa [#allocation9], 0
    %26 = vsyncpa [#allocation12], 0
    %27 = vsyncpa [#allocation4], 0
    %s28 = scalar_lea.sflag [#allocation4], 1
    %29 = vsyncpa %s28, 0
    %30 = vsyncpa [#allocation16], 0
    %s31 = scalar_lea.sflag [#allocation16], 1
    %32 = vsyncpa %s31, 0
    loop: start=0, step=1, limit=4
    $region2: #{tpu_custom_call.1} parent=1 // loop_pre_header
      _
    $region3: #{tpu_custom_call.1} parent=1 // loop_header
      %s34 = sphi 0, %s38
      %p35 = scmp.ge.s32.totalorder %s34, 4
      %s44 = sphi 0, %s46
      %s47 = sphi 0, %s44
      %s48 = sphi 0, %s47
      %s64 = sphi 0, %s48
      %s68 = sphi 0, %s68
      %s70 = sphi 0, %s68
      %s71 = sphi 0, %s70
      %s85 = sphi 0, %s71
      %s89 = sphi 0, %s89
      %s91 = sphi 0, %s89
      %s92 = sphi 0, %s91
      %s106 = sphi 0, %s92
      %s110 = sphi 0, %s110
      %s112 = sphi 0, %s110
      %s113 = sphi 0, %s112
      %s127 = sphi 0, %s113
      %s131 = sphi 0, %s131
      %s133 = sphi 0, %s131
      %s134 = sphi 0, %s133
      %s148 = sphi 0, %s134
      %s152 = sphi 0, %s152
      %s154 = sphi 0, %s152
      %s155 = sphi 0, %s154
      %s169 = sphi 0, %s155
      %s173 = sphi 0, %s173
      %s175 = sphi 0, %s173
      %s176 = sphi 0, %s175
      %s190 = sphi 0, %s176
      %s194 = sphi 0, %s194
      %s196 = sphi 0, %s194
      %s197 = sphi 0, %s196
      %s211 = sphi 0, %s197
      %s215 = sphi 0, %s215
      %s217 = sphi 0, %s215
      %s218 = sphi 0, %s217
      %s232 = sphi 0, %s218
      %s236 = sphi 0, %s236
      %s238 = sphi 0, %s236
      %s239 = sphi 0, %s238
      %s253 = sphi 0, %s239
      %s257 = sphi 0, %s257
      %s259 = sphi 0, %s257
      %s260 = sphi 0, %s259
      %s274 = sphi 0, %s260
      %s278 = sphi 0, %s278
      %s280 = sphi 0, %s278
      %s281 = sphi 0, %s280
      %s295 = sphi 0, %s281
      %s299 = sphi 0, %s299
      %s301 = sphi 0, %s299
      %s302 = sphi 0, %s301
      %s316 = sphi 0, %s302
      %s320 = sphi 0, %s320
      %s322 = sphi 0, %s320
      %s323 = sphi 0, %s322
      %s337 = sphi 0, %s323
      %s343 = sphi 0, %s345
      %s346 = sphi 0, %s343
      %s347 = sphi 0, %s346
      %s363 = sphi 0, %s347
      %s369 = sphi 0, %s371
      %s372 = sphi 0, %s369
      %s373 = sphi 0, %s372
      %s389 = sphi 0, %s373
    $region4: #{tpu_custom_call.1} parent=1 // loop_header_branch
      %37 = sbr.rel (%p35) target = $region8
    $region5: #{tpu_custom_call.1} parent=1 // loop_body
      %s39 = ssub.s32 %s34, 1
      %s40 = ssub.s32 %s34, 2
      %s41 = sadd.s32 %s34, 1
      %s42 = ssub.s32 %s34, %s41
      %p43 = scmp.eq.s32.totalorder %s42, 0
      %s45 = sadd.s32 %s44, 1
      %s46 = scalar_select %p43, %s44, %s45
      %p49 = pneg %p43
      %p50 = scmp.eq.s32.totalorder %s34, 1
      %p51 = por %p49, %p50
      %p52 = scmp.ne.s32.totalorder %s44, %s47
      %p53 = scmp.eq.s32.totalorder %s34, 0
      %p54 = por %p52, %p53
      %p55 = scmp.ne.s32.totalorder %s44, %s47
      %p56 = scmp.eq.s32.totalorder %s39, 1
      %p57 = por %p55, %p56
      %p58 = scmp.ne.s32.totalorder %s47, %s48
      %p59 = scmp.eq.s32.totalorder %s39, 0
      %p60 = por %p58, %p59
      %p61 = scmp.ne.s32.totalorder %s47, %s48
      %p62 = scmp.eq.s32.totalorder %s40, 1
      %p63 = por %p61, %p62
      %p65 = scmp.ne.s32.totalorder %s48, %s64
      %p66 = scmp.eq.s32.totalorder %s40, 0
      %p67 = por %p65, %p66
      %s69 = sadd.s32 %s68, 1
      %p72 = scmp.eq.s32.totalorder %s34, 1
      %p73 = scmp.ne.s32.totalorder %s68, %s70
      %p74 = scmp.eq.s32.totalorder %s34, 0
      %p75 = por %p73, %p74
      %p76 = scmp.ne.s32.totalorder %s68, %s70
      %p77 = scmp.eq.s32.totalorder %s39, 1
      %p78 = por %p76, %p77
      %p79 = scmp.ne.s32.totalorder %s70, %s71
      %p80 = scmp.eq.s32.totalorder %s39, 0
      %p81 = por %p79, %p80
      %p82 = scmp.ne.s32.totalorder %s70, %s71
      %p83 = scmp.eq.s32.totalorder %s40, 1
      %p84 = por %p82, %p83
      %p86 = scmp.ne.s32.totalorder %s71, %s85
      %p87 = scmp.eq.s32.totalorder %s40, 0
      %p88 = por %p86, %p87
      %s90 = sadd.s32 %s89, 1
      %p93 = scmp.eq.s32.totalorder %s34, 1
      %p94 = scmp.ne.s32.totalorder %s89, %s91
      %p95 = scmp.eq.s32.totalorder %s34, 0
      %p96 = por %p94, %p95
      %p97 = scmp.ne.s32.totalorder %s89, %s91
      %p98 = scmp.eq.s32.totalorder %s39, 1
      %p99 = por %p97, %p98
      %p100 = scmp.ne.s32.totalorder %s91, %s92
      %p101 = scmp.eq.s32.totalorder %s39, 0
      %p102 = por %p100, %p101
      %p103 = scmp.ne.s32.totalorder %s91, %s92
      %p104 = scmp.eq.s32.totalorder %s40, 1
      %p105 = por %p103, %p104
      %p107 = scmp.ne.s32.totalorder %s92, %s106
      %p108 = scmp.eq.s32.totalorder %s40, 0
      %p109 = por %p107, %p108
      %s111 = sadd.s32 %s110, 1
      %p114 = scmp.eq.s32.totalorder %s34, 1
      %p115 = scmp.ne.s32.totalorder %s110, %s112
      %p116 = scmp.eq.s32.totalorder %s34, 0
      %p117 = por %p115, %p116
      %p118 = scmp.ne.s32.totalorder %s110, %s112
      %p119 = scmp.eq.s32.totalorder %s39, 1
      %p120 = por %p118, %p119
      %p121 = scmp.ne.s32.totalorder %s112, %s113
      %p122 = scmp.eq.s32.totalorder %s39, 0
      %p123 = por %p121, %p122
      %p124 = scmp.ne.s32.totalorder %s112, %s113
      %p125 = scmp.eq.s32.totalorder %s40, 1
      %p126 = por %p124, %p125
      %p128 = scmp.ne.s32.totalorder %s113, %s127
      %p129 = scmp.eq.s32.totalorder %s40, 0
      %p130 = por %p128, %p129
      %s132 = sadd.s32 %s131, 1
      %p135 = scmp.eq.s32.totalorder %s34, 1
      %p136 = scmp.ne.s32.totalorder %s131, %s133
      %p137 = scmp.eq.s32.totalorder %s34, 0
      %p138 = por %p136, %p137
      %p139 = scmp.ne.s32.totalorder %s131, %s133
      %p140 = scmp.eq.s32.totalorder %s39, 1
      %p141 = por %p139, %p140
      %p142 = scmp.ne.s32.totalorder %s133, %s134
      %p143 = scmp.eq.s32.totalorder %s39, 0
      %p144 = por %p142, %p143
      %p145 = scmp.ne.s32.totalorder %s133, %s134
      %p146 = scmp.eq.s32.totalorder %s40, 1
      %p147 = por %p145, %p146
      %p149 = scmp.ne.s32.totalorder %s134, %s148
      %p150 = scmp.eq.s32.totalorder %s40, 0
      %p151 = por %p149, %p150
      %s153 = sadd.s32 %s152, 1
      %p156 = scmp.eq.s32.totalorder %s34, 1
      %p157 = scmp.ne.s32.totalorder %s152, %s154
      %p158 = scmp.eq.s32.totalorder %s34, 0
      %p159 = por %p157, %p158
      %p160 = scmp.ne.s32.totalorder %s152, %s154
      %p161 = scmp.eq.s32.totalorder %s39, 1
      %p162 = por %p160, %p161
      %p163 = scmp.ne.s32.totalorder %s154, %s155
      %p164 = scmp.eq.s32.totalorder %s39, 0
      %p165 = por %p163, %p164
      %p166 = scmp.ne.s32.totalorder %s154, %s155
      %p167 = scmp.eq.s32.totalorder %s40, 1
      %p168 = por %p166, %p167
      %p170 = scmp.ne.s32.totalorder %s155, %s169
      %p171 = scmp.eq.s32.totalorder %s40, 0
      %p172 = por %p170, %p171
      %s174 = sadd.s32 %s173, 1
      %p177 = scmp.eq.s32.totalorder %s34, 1
      %p178 = scmp.ne.s32.totalorder %s173, %s175
      %p179 = scmp.eq.s32.totalorder %s34, 0
      %p180 = por %p178, %p179
      %p181 = scmp.ne.s32.totalorder %s173, %s175
      %p182 = scmp.eq.s32.totalorder %s39, 1
      %p183 = por %p181, %p182
      %p184 = scmp.ne.s32.totalorder %s175, %s176
      %p185 = scmp.eq.s32.totalorder %s39, 0
      %p186 = por %p184, %p185
      %p187 = scmp.ne.s32.totalorder %s175, %s176
      %p188 = scmp.eq.s32.totalorder %s40, 1
      %p189 = por %p187, %p188
      %p191 = scmp.ne.s32.totalorder %s176, %s190
      %p192 = scmp.eq.s32.totalorder %s40, 0
      %p193 = por %p191, %p192
      %s195 = sadd.s32 %s194, 1
      %p198 = scmp.eq.s32.totalorder %s34, 1
      %p199 = scmp.ne.s32.totalorder %s194, %s196
      %p200 = scmp.eq.s32.totalorder %s34, 0
      %p201 = por %p199, %p200
      %p202 = scmp.ne.s32.totalorder %s194, %s196
      %p203 = scmp.eq.s32.totalorder %s39, 1
      %p204 = por %p202, %p203
      %p205 = scmp.ne.s32.totalorder %s196, %s197
      %p206 = scmp.eq.s32.totalorder %s39, 0
      %p207 = por %p205, %p206
      %p208 = scmp.ne.s32.totalorder %s196, %s197
      %p209 = scmp.eq.s32.totalorder %s40, 1
      %p210 = por %p208, %p209
      %p212 = scmp.ne.s32.totalorder %s197, %s211
      %p213 = scmp.eq.s32.totalorder %s40, 0
      %p214 = por %p212, %p213
      %s216 = sadd.s32 %s215, 1
      %p219 = scmp.eq.s32.totalorder %s34, 1
      %p220 = scmp.ne.s32.totalorder %s215, %s217
      %p221 = scmp.eq.s32.totalorder %s34, 0
      %p222 = por %p220, %p221
      %p223 = scmp.ne.s32.totalorder %s215, %s217
      %p224 = scmp.eq.s32.totalorder %s39, 1
      %p225 = por %p223, %p224
      %p226 = scmp.ne.s32.totalorder %s217, %s218
      %p227 = scmp.eq.s32.totalorder %s39, 0
      %p228 = por %p226, %p227
      %p229 = scmp.ne.s32.totalorder %s217, %s218
      %p230 = scmp.eq.s32.totalorder %s40, 1
      %p231 = por %p229, %p230
      %p233 = scmp.ne.s32.totalorder %s218, %s232
      %p234 = scmp.eq.s32.totalorder %s40, 0
      %p235 = por %p233, %p234
      %s237 = sadd.s32 %s236, 1
      %p240 = scmp.eq.s32.totalorder %s34, 1
      %p241 = scmp.ne.s32.totalorder %s236, %s238
      %p242 = scmp.eq.s32.totalorder %s34, 0
      %p243 = por %p241, %p242
      %p244 = scmp.ne.s32.totalorder %s236, %s238
      %p245 = scmp.eq.s32.totalorder %s39, 1
      %p246 = por %p244, %p245
      %p247 = scmp.ne.s32.totalorder %s238, %s239
      %p248 = scmp.eq.s32.totalorder %s39, 0
      %p249 = por %p247, %p248
      %p250 = scmp.ne.s32.totalorder %s238, %s239
      %p251 = scmp.eq.s32.totalorder %s40, 1
      %p252 = por %p250, %p251
      %p254 = scmp.ne.s32.totalorder %s239, %s253
      %p255 = scmp.eq.s32.totalorder %s40, 0
      %p256 = por %p254, %p255
      %s258 = sadd.s32 %s257, 1
      %p261 = scmp.eq.s32.totalorder %s34, 1
      %p262 = scmp.ne.s32.totalorder %s257, %s259
      %p263 = scmp.eq.s32.totalorder %s34, 0
      %p264 = por %p262, %p263
      %p265 = scmp.ne.s32.totalorder %s257, %s259
      %p266 = scmp.eq.s32.totalorder %s39, 1
      %p267 = por %p265, %p266
      %p268 = scmp.ne.s32.totalorder %s259, %s260
      %p269 = scmp.eq.s32.totalorder %s39, 0
      %p270 = por %p268, %p269
      %p271 = scmp.ne.s32.totalorder %s259, %s260
      %p272 = scmp.eq.s32.totalorder %s40, 1
      %p273 = por %p271, %p272
      %p275 = scmp.ne.s32.totalorder %s260, %s274
      %p276 = scmp.eq.s32.totalorder %s40, 0
      %p277 = por %p275, %p276
      %s279 = sadd.s32 %s278, 1
      %p282 = scmp.eq.s32.totalorder %s34, 1
      %p283 = scmp.ne.s32.totalorder %s278, %s280
      %p284 = scmp.eq.s32.totalorder %s34, 0
      %p285 = por %p283, %p284
      %p286 = scmp.ne.s32.totalorder %s278, %s280
      %p287 = scmp.eq.s32.totalorder %s39, 1
      %p288 = por %p286, %p287
      %p289 = scmp.ne.s32.totalorder %s280, %s281
      %p290 = scmp.eq.s32.totalorder %s39, 0
      %p291 = por %p289, %p290
      %p292 = scmp.ne.s32.totalorder %s280, %s281
      %p293 = scmp.eq.s32.totalorder %s40, 1
      %p294 = por %p292, %p293
      %p296 = scmp.ne.s32.totalorder %s281, %s295
      %p297 = scmp.eq.s32.totalorder %s40, 0
      %p298 = por %p296, %p297
      %s300 = sadd.s32 %s299, 1
      %p303 = scmp.eq.s32.totalorder %s34, 1
      %p304 = scmp.ne.s32.totalorder %s299, %s301
      %p305 = scmp.eq.s32.totalorder %s34, 0
      %p306 = por %p304, %p305
      %p307 = scmp.ne.s32.totalorder %s299, %s301
      %p308 = scmp.eq.s32.totalorder %s39, 1
      %p309 = por %p307, %p308
      %p310 = scmp.ne.s32.totalorder %s301, %s302
      %p311 = scmp.eq.s32.totalorder %s39, 0
      %p312 = por %p310, %p311
      %p313 = scmp.ne.s32.totalorder %s301, %s302
      %p314 = scmp.eq.s32.totalorder %s40, 1
      %p315 = por %p313, %p314
      %p317 = scmp.ne.s32.totalorder %s302, %s316
      %p318 = scmp.eq.s32.totalorder %s40, 0
      %p319 = por %p317, %p318
      %s321 = sadd.s32 %s320, 1
      %p324 = scmp.eq.s32.totalorder %s34, 1
      %p325 = scmp.ne.s32.totalorder %s320, %s322
      %p326 = scmp.eq.s32.totalorder %s34, 0
      %p327 = por %p325, %p326
      %p328 = scmp.ne.s32.totalorder %s320, %s322
      %p329 = scmp.eq.s32.totalorder %s39, 1
      %p330 = por %p328, %p329
      %p331 = scmp.ne.s32.totalorder %s322, %s323
      %p332 = scmp.eq.s32.totalorder %s39, 0
      %p333 = por %p331, %p332
      %p334 = scmp.ne.s32.totalorder %s322, %s323
      %p335 = scmp.eq.s32.totalorder %s40, 1
      %p336 = por %p334, %p335
      %p338 = scmp.ne.s32.totalorder %s323, %s337
      %p339 = scmp.eq.s32.totalorder %s40, 0
      %p340 = por %p338, %p339
      %s341 = ssub.s32 %s34, %s41
      %p342 = scmp.eq.s32.totalorder %s341, 0
      %s344 = sadd.s32 %s343, 1
      %s345 = scalar_select %p342, %s343, %s344
      %p348 = pneg %p342
      %p349 = scmp.eq.s32.totalorder %s34, 1
      %p350 = por %p348, %p349
      %p351 = scmp.ne.s32.totalorder %s343, %s346
      %p352 = scmp.eq.s32.totalorder %s34, 0
      %p353 = por %p351, %p352
      %p354 = scmp.ne.s32.totalorder %s343, %s346
      %p355 = scmp.eq.s32.totalorder %s39, 1
      %p356 = por %p354, %p355
      %p357 = scmp.ne.s32.totalorder %s346, %s347
      %p358 = scmp.eq.s32.totalorder %s39, 0
      %p359 = por %p357, %p358
      %p360 = scmp.ne.s32.totalorder %s346, %s347
      %p361 = scmp.eq.s32.totalorder %s40, 1
      %p362 = por %p360, %p361
      %p364 = scmp.ne.s32.totalorder %s347, %s363
      %p365 = scmp.eq.s32.totalorder %s40, 0
      %p366 = por %p364, %p365
      %s367 = ssub.s32 %s34, %s41
      %p368 = scmp.eq.s32.totalorder %s367, 0
      %s370 = sadd.s32 %s369, 1
      %s371 = scalar_select %p368, %s369, %s370
      %p374 = pneg %p368
      %p375 = scmp.eq.s32.totalorder %s34, 1
      %p376 = por %p374, %p375
      %p377 = scmp.ne.s32.totalorder %s369, %s372
      %p378 = scmp.eq.s32.totalorder %s34, 0
      %p379 = por %p377, %p378
      %p380 = scmp.ne.s32.totalorder %s369, %s372
      %p381 = scmp.eq.s32.totalorder %s39, 1
      %p382 = por %p380, %p381
      %p383 = scmp.ne.s32.totalorder %s372, %s373
      %p384 = scmp.eq.s32.totalorder %s39, 0
      %p385 = por %p383, %p384
      %p386 = scmp.ne.s32.totalorder %s372, %s373
      %p387 = scmp.eq.s32.totalorder %s40, 1
      %p388 = por %p386, %p387
      %p390 = scmp.ne.s32.totalorder %s373, %s389
      %p391 = scmp.eq.s32.totalorder %s40, 0
      %p392 = por %p390, %p391
      %p393 = scmp.le.s32.totalorder 1, %s34
      %p394 = scmp.lt.s32.totalorder %s34, 3
      %p395 = pnand %p393, %p394
      %p396 = pneg %p395
      // Predicated region
      $region9: #{tpu_custom_call.1} parent=5 // pred_check
        _
      $region10: #{tpu_custom_call.1} parent=5 // pred_check_branch
        %398 = sbr.rel (%p395) target = $region12
      $region11: #{tpu_custom_call.1} parent=5 // pred_region
        %s399 = ssub.s32 %s34, 1
        // Predicated region
        $region13: #{tpu_custom_call.1} parent=11 // pred_check
          %p400 = pneg %p81
        $region14: #{tpu_custom_call.1} parent=11 // pred_check_branch
          %402 = sbr.rel (%p400) target = $region16
        $region15: #{tpu_custom_call.1} parent=11 // pred_region
          %s404 = ssub.s32 128, 128
          %405 = vsyncadd [#allocation6], %s404
          %s407 = sshll.u32 [#allocation5], 4
          %s408 = int_to_ptr.vmem [resolvable:$true] %s407
          %410 = dma.hbm_to_vmem [thread:$0]  %s1, 128, %s408, [#allocation6]
        $region16: #{tpu_custom_call.1} parent=11 // pred_fallthru
          _
        // Predicated region
        $region17: #{tpu_custom_call.1} parent=11 // pred_check
          %p411 = pneg %p102
        $region18: #{tpu_custom_call.1} parent=11 // pred_check_branch
          %413 = sbr.rel (%p411) target = $region20
        $region19: #{tpu_custom_call.1} parent=11 // pred_region
          %s415 = ssub.s32 512, 512
          %416 = vsyncadd [#allocation6], %s415
          %s417 = sshll.u32 [#allocation7], 4
          %s418 = int_to_ptr.vmem [resolvable:$true] %s417
          %423 = dma.hbm_to_vmem [thread:$0]  %s2, 512, %s418, [#allocation6], 128, 128, 8
        $region20: #{tpu_custom_call.1} parent=11 // pred_fallthru
          _
        // Predicated region
        $region21: #{tpu_custom_call.1} parent=11 // pred_check
          %p424 = pneg %p123
        $region22: #{tpu_custom_call.1} parent=11 // pred_check_branch
          %426 = sbr.rel (%p424) target = $region24
        $region23: #{tpu_custom_call.1} parent=11 // pred_region
          %s428 = ssub.s32 512, 512
          %429 = vsyncadd [#allocation9], %s428
          %s430 = sshll.u32 [#allocation8], 4
          %s431 = int_to_ptr.vmem [resolvable:$true] %s430
          %436 = dma.hbm_to_vmem [thread:$0]  %s3, 512, %s431, [#allocation9], 128, 128, 8
        $region24: #{tpu_custom_call.1} parent=11 // pred_fallthru
          _
        // Predicated region
        $region25: #{tpu_custom_call.1} parent=11 // pred_check
          %p437 = pneg %p144
        $region26: #{tpu_custom_call.1} parent=11 // pred_check_branch
          %439 = sbr.rel (%p437) target = $region28
        $region27: #{tpu_custom_call.1} parent=11 // pred_region
          %s441 = ssub.s32 512, 512
          %442 = vsyncadd [#allocation9], %s441
          %s443 = sshll.u32 [#allocation10], 4
          %s444 = int_to_ptr.vmem [resolvable:$true] %s443
          %449 = dma.hbm_to_vmem [thread:$0]  %s4, 512, %s444, [#allocation9], 128, 128, 8
        $region28: #{tpu_custom_call.1} parent=11 // pred_fallthru
          _
        // Predicated region
        $region29: #{tpu_custom_call.1} parent=11 // pred_check
          %p450 = pneg %p165
        $region30: #{tpu_custom_call.1} parent=11 // pred_check_branch
          %452 = sbr.rel (%p450) target = $region32
        $region31: #{tpu_custom_call.1} parent=11 // pred_region
          %s454 = ssub.s32 512, 512
          %455 = vsyncadd [#allocation12], %s454
          %s456 = sshll.u32 [#allocation11], 4
          %s457 = int_to_ptr.vmem [resolvable:$true] %s456
          %462 = dma.hbm_to_vmem [thread:$0]  %s5, 512, %s457, [#allocation12], 128, 128, 8
        $region32: #{tpu_custom_call.1} parent=11 // pred_fallthru
          _
        // Predicated region
        $region33: #{tpu_custom_call.1} parent=11 // pred_check
          %p463 = pneg %p186
        $region34: #{tpu_custom_call.1} parent=11 // pred_check_branch
          %465 = sbr.rel (%p463) target = $region36
        $region35: #{tpu_custom_call.1} parent=11 // pred_region
          _
        $region36: #{tpu_custom_call.1} parent=11 // pred_fallthru
          _
        // Predicated region
        $region37: #{tpu_custom_call.1} parent=11 // pred_check
          %p466 = pneg %p207
        $region38: #{tpu_custom_call.1} parent=11 // pred_check_branch
          %468 = sbr.rel (%p466) target = $region40
        $region39: #{tpu_custom_call.1} parent=11 // pred_region
          _
        $region40: #{tpu_custom_call.1} parent=11 // pred_fallthru
          _
        // Predicated region
        $region41: #{tpu_custom_call.1} parent=11 // pred_check
          %p469 = pneg %p228
        $region42: #{tpu_custom_call.1} parent=11 // pred_check_branch
          %471 = sbr.rel (%p469) target = $region44
        $region43: #{tpu_custom_call.1} parent=11 // pred_region
          %s473 = ssub.s32 512, 512
          %474 = vsyncadd [#allocation12], %s473
          %s475 = sshll.u32 [#allocation13], 4
          %s476 = int_to_ptr.vmem [resolvable:$true] %s475
          %481 = dma.hbm_to_vmem [thread:$0]  %s8, 512, %s476, [#allocation12], 128, 128, 8
        $region44: #{tpu_custom_call.1} parent=11 // pred_fallthru
          _
        // Predicated region
        $region45: #{tpu_custom_call.1} parent=11 // pred_check
          %p482 = pneg %p249
        $region46: #{tpu_custom_call.1} parent=11 // pred_check_branch
          %484 = sbr.rel (%p482) target = $region48
        $region47: #{tpu_custom_call.1} parent=11 // pred_region
          _
        $region48: #{tpu_custom_call.1} parent=11 // pred_fallthru
          _
        // Predicated region
        $region49: #{tpu_custom_call.1} parent=11 // pred_check
          %p485 = pneg %p270
        $region50: #{tpu_custom_call.1} parent=11 // pred_check_branch
          %487 = sbr.rel (%p485) target = $region52
        $region51: #{tpu_custom_call.1} parent=11 // pred_region
          _
        $region52: #{tpu_custom_call.1} parent=11 // pred_fallthru
          _
        // Predicated region
        $region53: #{tpu_custom_call.1} parent=11 // pred_check
          %p488 = pneg %p291
        $region54: #{tpu_custom_call.1} parent=11 // pred_check_branch
          %490 = sbr.rel (%p488) target = $region56
        $region55: #{tpu_custom_call.1} parent=11 // pred_region
          _
        $region56: #{tpu_custom_call.1} parent=11 // pred_fallthru
          _
        // Predicated region
        $region57: #{tpu_custom_call.1} parent=11 // pred_check
          %p491 = pneg %p312
        $region58: #{tpu_custom_call.1} parent=11 // pred_check_branch
          %493 = sbr.rel (%p491) target = $region60
        $region59: #{tpu_custom_call.1} parent=11 // pred_region
          _
        $region60: #{tpu_custom_call.1} parent=11 // pred_fallthru
          _
        // Predicated region
        $region61: #{tpu_custom_call.1} parent=11 // pred_check
          %p494 = pneg %p333
        $region62: #{tpu_custom_call.1} parent=11 // pred_check_branch
          %496 = sbr.rel (%p494) target = $region64
        $region63: #{tpu_custom_call.1} parent=11 // pred_region
          _
        $region64: #{tpu_custom_call.1} parent=11 // pred_fallthru
          _
      $region12: #{tpu_custom_call.1} parent=5 // pred_fallthru
        _
      %p497 = scmp.lt.s32.totalorder %s34, 2
      // Predicated region
      $region65: #{tpu_custom_call.1} parent=5 // pred_check
        %p498 = pneg %p497
      $region66: #{tpu_custom_call.1} parent=5 // pred_check_branch
        %500 = sbr.rel (%p498) target = $region68
      $region67: #{tpu_custom_call.1} parent=5 // pred_region
        // Predicated region
        $region69: #{tpu_custom_call.1} parent=67 // pred_check
          %p501 = pneg %p54
        $region70: #{tpu_custom_call.1} parent=67 // pred_check_branch
          %503 = sbr.rel (%p501) target = $region72
        $region71: #{tpu_custom_call.1} parent=67 // pred_region
          %s504 = sand.u32 %s44, 1
          %s505 = scalar_lea.sflag [#allocation3], %s504
          %s506 = sand.u32 %s44, 1
          %s507 = smul.addr %s506, 8
          %s508 = scalar_lea.vmem [#allocation2], %s507
          %s510 = ssub.s32 128, 128
          %511 = vsyncadd %s505, %s510
          %s512 = smul.addr %s34, 128
          %s513 = scalar_lea.hbm %s0, %s512
          %s515 = sshll.u32 %s508, 4
          %s516 = int_to_ptr.vmem [resolvable:$true] %s515
          %518 = dma.hbm_to_vmem [thread:$0]  %s513, 128, %s516, %s505
        $region72: #{tpu_custom_call.1} parent=67 // pred_fallthru
          _
      $region68: #{tpu_custom_call.1} parent=5 // pred_fallthru
        _
      %p519 = scmp.le.s32.totalorder 1, %s34
      %p520 = scmp.lt.s32.totalorder %s34, 3
      %p521 = pnand %p519, %p520
      %p522 = pneg %p521
      // Predicated region
      $region73: #{tpu_custom_call.1} parent=5 // pred_check
        _
      $region74: #{tpu_custom_call.1} parent=5 // pred_check_branch
        %524 = sbr.rel (%p521) target = $region76
      $region75: #{tpu_custom_call.1} parent=5 // pred_region
        %s525 = ssub.s32 %s34, 1
        %s526 = sand.u32 %s47, 1
        %s527 = scalar_lea.sflag [#allocation3], %s526
        %s528 = sand.u32 %s47, 1
        %s529 = smul.addr %s528, 8
        %s530 = scalar_lea.vmem [#allocation2], %s529
        // Predicated region
        $region77: #{tpu_custom_call.1} parent=75 // pred_check
          %p531 = pneg %p60
        $region78: #{tpu_custom_call.1} parent=75 // pred_check_branch
          %533 = sbr.rel (%p531) target = $region80
        $region79: #{tpu_custom_call.1} parent=75 // pred_region
          %534 = dma.done %s527, 128
        $region80: #{tpu_custom_call.1} parent=75 // pred_fallthru
          _
        // Predicated region
        $region81: #{tpu_custom_call.1} parent=75 // pred_check
          %p535 = pneg %p81
        $region82: #{tpu_custom_call.1} parent=75 // pred_check_branch
          %537 = sbr.rel (%p535) target = $region84
        $region83: #{tpu_custom_call.1} parent=75 // pred_region
          %538 = dma.done [#allocation6], 128
        $region84: #{tpu_custom_call.1} parent=75 // pred_fallthru
          _
        // Predicated region
        $region85: #{tpu_custom_call.1} parent=75 // pred_check
          %p539 = pneg %p102
        $region86: #{tpu_custom_call.1} parent=75 // pred_check_branch
          %541 = sbr.rel (%p539) target = $region88
        $region87: #{tpu_custom_call.1} parent=75 // pred_region
          %542 = dma.done [#allocation6], 512
        $region88: #{tpu_custom_call.1} parent=75 // pred_fallthru
          _
        // Predicated region
        $region89: #{tpu_custom_call.1} parent=75 // pred_check
          %p543 = pneg %p123
        $region90: #{tpu_custom_call.1} parent=75 // pred_check_branch
          %545 = sbr.rel (%p543) target = $region92
        $region91: #{tpu_custom_call.1} parent=75 // pred_region
          %546 = dma.done [#allocation9], 512
        $region92: #{tpu_custom_call.1} parent=75 // pred_fallthru
          _
        // Predicated region
        $region93: #{tpu_custom_call.1} parent=75 // pred_check
          %p547 = pneg %p144
        $region94: #{tpu_custom_call.1} parent=75 // pred_check_branch
          %549 = sbr.rel (%p547) target = $region96
        $region95: #{tpu_custom_call.1} parent=75 // pred_region
          %550 = dma.done [#allocation9], 512
        $region96: #{tpu_custom_call.1} parent=75 // pred_fallthru
          _
        // Predicated region
        $region97: #{tpu_custom_call.1} parent=75 // pred_check
          %p551 = pneg %p165
        $region98: #{tpu_custom_call.1} parent=75 // pred_check_branch
          %553 = sbr.rel (%p551) target = $region100
        $region99: #{tpu_custom_call.1} parent=75 // pred_region
          %554 = dma.done [#allocation12], 512
        $region100: #{tpu_custom_call.1} parent=75 // pred_fallthru
          _
        // Predicated region
        $region101: #{tpu_custom_call.1} parent=75 // pred_check
          %p555 = pneg %p228
        $region102: #{tpu_custom_call.1} parent=75 // pred_check_branch
          %557 = sbr.rel (%p555) target = $region104
        $region103: #{tpu_custom_call.1} parent=75 // pred_region
          %558 = dma.done [#allocation12], 512
        $region104: #{tpu_custom_call.1} parent=75 // pred_fallthru
          _
        %s559 = sand.u32 %s47, 1
        %s560 = scalar_lea.sflag [#allocation3], %s559
        %s561 = sand.u32 %s47, 1
        %s562 = smul.addr %s561, 8
        %s563 = scalar_lea.vmem [#allocation2], %s562
        %p564 = pneg %p60
        %p565 = pneg %p57
        %p566 = pneg %p81
        %p567 = pneg %p78
        %p568 = pneg %p102
        %p569 = pneg %p99
        %p570 = pneg %p123
        %p571 = pneg %p120
        %p572 = pneg %p144
        %p573 = pneg %p141
        %p574 = pneg %p165
        %p575 = pneg %p162
        %p576 = pneg %p186
        %p577 = pneg %p183
        %p578 = pneg %p207
        %p579 = pneg %p204
        %p580 = pneg %p228
        %p581 = pneg %p225
        %p582 = pneg %p249
        %p583 = pneg %p246
        %p584 = pneg %p270
        %p585 = pneg %p267
        %p586 = pneg %p291
        %p587 = pneg %p288
        %p588 = pneg %p312
        %p589 = pneg %p309
        %p590 = pneg %p333
        %p591 = pneg %p330
        %p592 = pneg %p359
        %p593 = pneg %p356
        %s594 = sand.u32 %s346, 1
        %s595 = scalar_lea.sflag [#allocation4], %s594
        %s596 = sand.u32 %s346, 1
        %s597 = smul.addr %s596, 8
        %s598 = scalar_lea.vmem [#allocation14], %s597
        %p599 = pneg %p385
        %p600 = pneg %p382
        %s601 = sand.u32 %s372, 1
        %s602 = scalar_lea.sflag [#allocation16], %s601
        %s603 = sand.u32 %s372, 1
        %s604 = smul.addr %s603, 8
        %s605 = scalar_lea.vmem [#allocation15], %s604
        %v606 = vld [vmem:[%s530] sm:$0xff]
        %v607 = vld [vmem:[#allocation7] sm:$0xff]
        %v608 = vld [vmem:[#allocation7 + $0x8] sm:$0xff]
        %v609 = vld [vmem:[#allocation7 + $0x10] sm:$0xff]
        %v610 = vld [vmem:[#allocation7 + $0x18] sm:$0xff]
        %vm611 = vcmask 261120
        %v613 = vsel %vm611, %v606, 0
        %615 = vmatprep.subr.mxu0 0.0
        %616 = vmatpush1.msra.mxu0 %v607
        %617 = vmatprep.subr.mxu0 0.0
        %618 = vmatpush1.msra.mxu0 %v608
        %619 = vmatprep.subr.mxu0 0.0
        %620 = vmatpush1.msra.mxu0 %v609
        %621 = vmatprep.subr.mxu0 0.0
        %622 = vmatpush1.msra.mxu0 %v610
        %623 = vmatprep.subr.mxu0 0.0
        %624 = vmatpush1.msra.mxu0 0.0
        %625 = vmatprep.subr.mxu0 0.0
        %626 = vmatpush1.msra.mxu0 0.0
        %627 = vmatprep.subr.mxu0 0.0
        %628 = vmatpush1.msra.mxu0 0.0
        %629 = vmatprep.subr.mxu0 0.0
        %630 = vmatpush1.msra.mxu0 0.0
        %631 = vmatprep.subr.mxu0 0.0
        %632 = vmatpush1.msra.mxu0 0.0
        %633 = vmatprep.subr.mxu0 0.0
        %634 = vmatpush1.msra.mxu0 0.0
        %635 = vmatprep.subr.mxu0 0.0
        %636 = vmatpush1.msra.mxu0 0.0
        %637 = vmatprep.subr.mxu0 0.0
        %638 = vmatpush1.msra.mxu0 0.0
        %639 = vmatprep.subr.mxu0 0.0
        %640 = vmatpush1.msra.mxu0 0.0
        %641 = vmatprep.subr.mxu0 0.0
        %642 = vmatpush1.msra.mxu0 0.0
        %643 = vmatprep.subr.mxu0 0.0
        %644 = vmatpush1.msra.mxu0 0.0
        %645 = vmatprep.subr.mxu0 0.0
        %646 = vmatpush1.msra.mxu0 0.0
        %647 = vmatprep.subr.mxu0 0.0
        %648 = vmatpush1.msra.mxu0 0.0
        %649 = vmatprep.subr.mxu0 0.0
        %650 = vmatpush1.msra.mxu0 0.0
        %651 = vmatprep.subr.mxu0 0.0
        %652 = vmatpush1.msra.mxu0 0.0
        %653 = vmatprep.subr.mxu0 0.0
        %654 = vmatpush1.msra.mxu0 0.0
        %655 = vmatprep.subr.mxu0 0.0
        %656 = vmatpush1.msra.mxu0 0.0
        %657 = vmatprep.subr.mxu0 0.0
        %658 = vmatpush1.msra.mxu0 0.0
        %659 = vmatprep.subr.mxu0 0.0
        %660 = vmatpush1.msra.mxu0 0.0
        %661 = vmatprep.subr.mxu0 0.0
        %662 = vmatpush1.msra.mxu0 0.0
        %663 = vmatprep.subr.mxu0 0.0
        %664 = vmatpush1.msra.mxu0 0.0
        %665 = vmatprep.subr.mxu0 0.0
        %666 = vmatpush1.msra.mxu0 0.0
        %667 = vmatprep.subr.mxu0 0.0
        %668 = vmatpush1.msra.mxu0 0.0
        %669 = vmatprep.subr.mxu0 0.0
        %670 = vmatpush1.msra.mxu0 0.0
        %671 = vmatprep.subr.mxu0 0.0
        %672 = vmatpush1.msra.mxu0 0.0
        %673 = vmatprep.subr.mxu0 0.0
        %674 = vmatpush1.msra.mxu0 0.0
        %675 = vmatprep.subr.mxu0 0.0
        %676 = vmatpush1.msra.mxu0 0.0
        %677 = vmatprep.subr.mxu0 0.0
        %678 = vmatpush1.msra.mxu0 0.0
        %679 = vmatprep.mubr.f32.mxu0 0.0
        %680 = vmatmul.mubr.f32.gmra.mrb[0].mxu0 %v613
        %v681 = vpop.f32.mrb[0].mxu0
        %v682 = vadd.f32 0.0, %v681
        %v683 = vpop.f32.mrb[0].mxu0
        %684 = vdwg.mxu0
        %v685 = vld [vmem:[#allocation8] sm:$0xff]
        %v686 = vld [vmem:[#allocation8 + $0x8] sm:$0xff]
        %v687 = vld [vmem:[#allocation8 + $0x10] sm:$0xff]
        %v688 = vld [vmem:[#allocation8 + $0x18] sm:$0xff]
        %689 = vmatprep.subr.mxu0 0.0
        %690 = vmatpush1.msra.mxu0 %v685
        %691 = vmatprep.subr.mxu0 0.0
        %692 = vmatpush1.msra.mxu0 %v686
        %693 = vmatprep.subr.mxu0 0.0
        %694 = vmatpush1.msra.mxu0 %v687
        %695 = vmatprep.subr.mxu0 0.0
        %696 = vmatpush1.msra.mxu0 %v688
        %697 = vmatprep.subr.mxu0 0.0
        %698 = vmatpush1.msra.mxu0 0.0
        %699 = vmatprep.subr.mxu0 0.0
        %700 = vmatpush1.msra.mxu0 0.0
        %701 = vmatprep.subr.mxu0 0.0
        %702 = vmatpush1.msra.mxu0 0.0
        %703 = vmatprep.subr.mxu0 0.0
        %704 = vmatpush1.msra.mxu0 0.0
        %705 = vmatprep.subr.mxu0 0.0
        %706 = vmatpush1.msra.mxu0 0.0
        %707 = vmatprep.subr.mxu0 0.0
        %708 = vmatpush1.msra.mxu0 0.0
        %709 = vmatprep.subr.mxu0 0.0
        %710 = vmatpush1.msra.mxu0 0.0
        %711 = vmatprep.subr.mxu0 0.0
        %712 = vmatpush1.msra.mxu0 0.0
        %713 = vmatprep.subr.mxu0 0.0
        %714 = vmatpush1.msra.mxu0 0.0
        %715 = vmatprep.subr.mxu0 0.0
        %716 = vmatpush1.msra.mxu0 0.0
        %717 = vmatprep.subr.mxu0 0.0
        %718 = vmatpush1.msra.mxu0 0.0
        %719 = vmatprep.subr.mxu0 0.0
        %720 = vmatpush1.msra.mxu0 0.0
        %721 = vmatprep.subr.mxu0 0.0
        %722 = vmatpush1.msra.mxu0 0.0
        %723 = vmatprep.subr.mxu0 0.0
        %724 = vmatpush1.msra.mxu0 0.0
        %725 = vmatprep.subr.mxu0 0.0
        %726 = vmatpush1.msra.mxu0 0.0
        %727 = vmatprep.subr.mxu0 0.0
        %728 = vmatpush1.msra.mxu0 0.0
        %729 = vmatprep.subr.mxu0 0.0
        %730 = vmatpush1.msra.mxu0 0.0
        %731 = vmatprep.subr.mxu0 0.0
        %732 = vmatpush1.msra.mxu0 0.0
        %733 = vmatprep.subr.mxu0 0.0
        %734 = vmatpush1.msra.mxu0 0.0
        %735 = vmatprep.subr.mxu0 0.0
        %736 = vmatpush1.msra.mxu0 0.0
        %737 = vmatprep.subr.mxu0 0.0
        %738 = vmatpush1.msra.mxu0 0.0
        %739 = vmatprep.subr.mxu0 0.0
        %740 = vmatpush1.msra.mxu0 0.0
        %741 = vmatprep.subr.mxu0 0.0
        %742 = vmatpush1.msra.mxu0 0.0
        %743 = vmatprep.subr.mxu0 0.0
        %744 = vmatpush1.msra.mxu0 0.0
        %745 = vmatprep.subr.mxu0 0.0
        %746 = vmatpush1.msra.mxu0 0.0
        %747 = vmatprep.subr.mxu0 0.0
        %748 = vmatpush1.msra.mxu0 0.0
        %749 = vmatprep.subr.mxu0 0.0
        %750 = vmatpush1.msra.mxu0 0.0
        %751 = vmatprep.subr.mxu0 0.0
        %752 = vmatpush1.msra.mxu0 0.0
        %753 = vmatprep.mubr.f32.mxu0 0.0
        %754 = vmatmul.mubr.f32.gmra.mrb[0].mxu0 %v613
        %v755 = vpop.f32.mrb[0].mxu0
        %v756 = vadd.f32 0.0, %v755
        %v757 = vpop.f32.mrb[0].mxu0
        %758 = vdwg.mxu0
        %v759 = vld [vmem:[#allocation10] sm:$0xff]
        %v760 = vld [vmem:[#allocation10 + $0x8] sm:$0xff]
        %v761 = vld [vmem:[#allocation10 + $0x10] sm:$0xff]
        %v762 = vld [vmem:[#allocation10 + $0x18] sm:$0xff]
        %763 = vmatprep.subr.mxu0 0.0
        %764 = vmatpush1.msra.mxu0 %v759
        %765 = vmatprep.subr.mxu0 0.0
        %766 = vmatpush1.msra.mxu0 %v760
        %767 = vmatprep.subr.mxu0 0.0
        %768 = vmatpush1.msra.mxu0 %v761
        %769 = vmatprep.subr.mxu0 0.0
        %770 = vmatpush1.msra.mxu0 %v762
        %771 = vmatprep.subr.mxu0 0.0
        %772 = vmatpush1.msra.mxu0 0.0
        %773 = vmatprep.subr.mxu0 0.0
        %774 = vmatpush1.msra.mxu0 0.0
        %775 = vmatprep.subr.mxu0 0.0
        %776 = vmatpush1.msra.mxu0 0.0
        %777 = vmatprep.subr.mxu0 0.0
        %778 = vmatpush1.msra.mxu0 0.0
        %779 = vmatprep.subr.mxu0 0.0
        %780 = vmatpush1.msra.mxu0 0.0
        %781 = vmatprep.subr.mxu0 0.0
        %782 = vmatpush1.msra.mxu0 0.0
        %783 = vmatprep.subr.mxu0 0.0
        %784 = vmatpush1.msra.mxu0 0.0
        %785 = vmatprep.subr.mxu0 0.0
        %786 = vmatpush1.msra.mxu0 0.0
        %787 = vmatprep.subr.mxu0 0.0
        %788 = vmatpush1.msra.mxu0 0.0
        %789 = vmatprep.subr.mxu0 0.0
        %790 = vmatpush1.msra.mxu0 0.0
        %791 = vmatprep.subr.mxu0 0.0
        %792 = vmatpush1.msra.mxu0 0.0
        %793 = vmatprep.subr.mxu0 0.0
        %794 = vmatpush1.msra.mxu0 0.0
        %795 = vmatprep.subr.mxu0 0.0
        %796 = vmatpush1.msra.mxu0 0.0
        %797 = vmatprep.subr.mxu0 0.0
        %798 = vmatpush1.msra.mxu0 0.0
        %799 = vmatprep.subr.mxu0 0.0
        %800 = vmatpush1.msra.mxu0 0.0
        %801 = vmatprep.subr.mxu0 0.0
        %802 = vmatpush1.msra.mxu0 0.0
        %803 = vmatprep.subr.mxu0 0.0
        %804 = vmatpush1.msra.mxu0 0.0
        %805 = vmatprep.subr.mxu0 0.0
        %806 = vmatpush1.msra.mxu0 0.0
        %807 = vmatprep.subr.mxu0 0.0
        %808 = vmatpush1.msra.mxu0 0.0
        %809 = vmatprep.subr.mxu0 0.0
        %810 = vmatpush1.msra.mxu0 0.0
        %811 = vmatprep.subr.mxu0 0.0
        %812 = vmatpush1.msra.mxu0 0.0
        %813 = vmatprep.subr.mxu0 0.0
        %814 = vmatpush1.msra.mxu0 0.0
        %815 = vmatprep.subr.mxu0 0.0
        %816 = vmatpush1.msra.mxu0 0.0
        %817 = vmatprep.subr.mxu0 0.0
        %818 = vmatpush1.msra.mxu0 0.0
        %819 = vmatprep.subr.mxu0 0.0
        %820 = vmatpush1.msra.mxu0 0.0
        %821 = vmatprep.subr.mxu0 0.0
        %822 = vmatpush1.msra.mxu0 0.0
        %823 = vmatprep.subr.mxu0 0.0
        %824 = vmatpush1.msra.mxu0 0.0
        %825 = vmatprep.subr.mxu0 0.0
        %826 = vmatpush1.msra.mxu0 0.0
        %827 = vmatprep.mubr.f32.mxu0 0.0
        %828 = vmatmul.mubr.f32.gmra.mrb[0].mxu0 %v613
        %v829 = vpop.f32.mrb[0].mxu0
        %v830 = vadd.f32 0.0, %v829
        %v831 = vpop.f32.mrb[0].mxu0
        %832 = vdwg.mxu0
        %v833 = vld [vmem:[#allocation5] sm:$0xff]
        %v835 = vsel %vm611, %v682, 0
        %v838 = vsel %vm611, %v756, 0
        %840 = vmatprep.subr.mxu0 0.0
        %841 = vmatpush1.xpose.msra.mxu0 %v838
        %842 = vmatprep.subr.mxu0 0.0
        %843 = vmatpush1.xpose.msra.mxu0 0.0
        %844 = vmatprep.subr.mxu0 0.0
        %845 = vmatpush1.xpose.msra.mxu0 0.0
        %846 = vmatprep.subr.mxu0 0.0
        %847 = vmatpush1.xpose.msra.mxu0 0.0
        %848 = vmatprep.subr.mxu0 0.0
        %849 = vmatpush1.xpose.msra.mxu0 0.0
        %850 = vmatprep.subr.mxu0 0.0
        %851 = vmatpush1.xpose.msra.mxu0 0.0
        %852 = vmatprep.subr.mxu0 0.0
        %853 = vmatpush1.xpose.msra.mxu0 0.0
        %854 = vmatprep.subr.mxu0 0.0
        %855 = vmatpush1.xpose.msra.mxu0 0.0
        %856 = vmatprep.subr.mxu0 0.0
        %857 = vmatpush1.xpose.msra.mxu0 0.0
        %858 = vmatprep.subr.mxu0 0.0
        %859 = vmatpush1.xpose.msra.mxu0 0.0
        %860 = vmatprep.subr.mxu0 0.0
        %861 = vmatpush1.xpose.msra.mxu0 0.0
        %862 = vmatprep.subr.mxu0 0.0
        %863 = vmatpush1.xpose.msra.mxu0 0.0
        %864 = vmatprep.subr.mxu0 0.0
        %865 = vmatpush1.xpose.msra.mxu0 0.0
        %866 = vmatprep.subr.mxu0 0.0
        %867 = vmatpush1.xpose.msra.mxu0 0.0
        %868 = vmatprep.subr.mxu0 0.0
        %869 = vmatpush1.xpose.msra.mxu0 0.0
        %870 = vmatprep.subr.mxu0 0.0
        %871 = vmatpush1.xpose.msra.mxu0 0.0
        %872 = vmatprep.subr.mxu0 0.0
        %873 = vmatpush1.xpose.msra.mxu0 0.0
        %874 = vmatprep.subr.mxu0 0.0
        %875 = vmatpush1.xpose.msra.mxu0 0.0
        %876 = vmatprep.subr.mxu0 0.0
        %877 = vmatpush1.xpose.msra.mxu0 0.0
        %878 = vmatprep.subr.mxu0 0.0
        %879 = vmatpush1.xpose.msra.mxu0 0.0
        %880 = vmatprep.subr.mxu0 0.0
        %881 = vmatpush1.xpose.msra.mxu0 0.0
        %882 = vmatprep.subr.mxu0 0.0
        %883 = vmatpush1.xpose.msra.mxu0 0.0
        %884 = vmatprep.subr.mxu0 0.0
        %885 = vmatpush1.xpose.msra.mxu0 0.0
        %886 = vmatprep.subr.mxu0 0.0
        %887 = vmatpush1.xpose.msra.mxu0 0.0
        %888 = vmatprep.subr.mxu0 0.0
        %889 = vmatpush1.xpose.msra.mxu0 0.0
        %890 = vmatprep.subr.mxu0 0.0
        %891 = vmatpush1.xpose.msra.mxu0 0.0
        %892 = vmatprep.subr.mxu0 0.0
        %893 = vmatpush1.xpose.msra.mxu0 0.0
        %894 = vmatprep.subr.mxu0 0.0
        %895 = vmatpush1.xpose.msra.mxu0 0.0
        %896 = vmatprep.subr.mxu0 0.0
        %897 = vmatpush1.xpose.msra.mxu0 0.0
        %898 = vmatprep.subr.mxu0 0.0
        %899 = vmatpush1.xpose.msra.mxu0 0.0
        %900 = vmatprep.subr.mxu0 0.0
        %901 = vmatpush1.xpose.msra.mxu0 0.0
        %902 = vmatprep.subr.mxu0 0.0
        %903 = vmatpush1.xpose.msra.mxu0 0.0
        %904 = vmatprep.mubr.f32.mxu0 0.0
        %905 = vmatmul.mubr.f32.gmra.mrb[0].mxu0 %v835
        %v906 = vpop.f32.mrb[0].mxu0
        %v907 = vadd.f32 %v833, %v906
        %v908 = vpop.f32.mrb[0].mxu0
        %909 = vdwg.mxu0
        %vm910 = vcmask 64512
        %v911 = vsel %vm910, %v907, -inf
        %912 = vmax.xlane.f32.xlu0 %v911
        %v913 = vpop.xlane.xlu0 %912
        %v914 = vsub.f32 %v907, %v913
        %v915 = vmul.f32 %v914, 1.442695
        %v916 = vpow.pop %v915
        %v917 = vsel %vm910, %v916, 0.0
        %918 = vadd.xlane.f32.xlu0 %v917
        %v919 = vpop.xlane.xlu0 %918
        %v920 = vrcp.pop %v919
        %v921 = vmul.f32 %v916, %v920
        %v923 = vsel %vm910, %v921, 0
        %925 = vmatprep.subr.mxu0 0.0
        %926 = vmatpush1.msra.mxu0 %v830
        %927 = vmatprep.subr.mxu0 0.0
        %928 = vmatpush1.msra.mxu0 0.0
        %929 = vmatprep.subr.mxu0 0.0
        %930 = vmatpush1.msra.mxu0 0.0
        %931 = vmatprep.subr.mxu0 0.0
        %932 = vmatpush1.msra.mxu0 0.0
        %933 = vmatprep.subr.mxu0 0.0
        %934 = vmatpush1.msra.mxu0 0.0
        %935 = vmatprep.subr.mxu0 0.0
        %936 = vmatpush1.msra.mxu0 0.0
        %937 = vmatprep.subr.mxu0 0.0
        %938 = vmatpush1.msra.mxu0 0.0
        %939 = vmatprep.subr.mxu0 0.0
        %940 = vmatpush1.msra.mxu0 0.0
        %941 = vmatprep.subr.mxu0 0.0
        %942 = vmatpush1.msra.mxu0 0.0
        %943 = vmatprep.subr.mxu0 0.0
        %944 = vmatpush1.msra.mxu0 0.0
        %945 = vmatprep.subr.mxu0 0.0
        %946 = vmatpush1.msra.mxu0 0.0
        %947 = vmatprep.subr.mxu0 0.0
        %948 = vmatpush1.msra.mxu0 0.0
        %949 = vmatprep.subr.mxu0 0.0
        %950 = vmatpush1.msra.mxu0 0.0
        %951 = vmatprep.subr.mxu0 0.0
        %952 = vmatpush1.msra.mxu0 0.0
        %953 = vmatprep.subr.mxu0 0.0
        %954 = vmatpush1.msra.mxu0 0.0
        %955 = vmatprep.subr.mxu0 0.0
        %956 = vmatpush1.msra.mxu0 0.0
        %957 = vmatprep.subr.mxu0 0.0
        %958 = vmatpush1.msra.mxu0 0.0
        %959 = vmatprep.subr.mxu0 0.0
        %960 = vmatpush1.msra.mxu0 0.0
        %961 = vmatprep.subr.mxu0 0.0
        %962 = vmatpush1.msra.mxu0 0.0
        %963 = vmatprep.subr.mxu0 0.0
        %964 = vmatpush1.msra.mxu0 0.0
        %965 = vmatprep.subr.mxu0 0.0
        %966 = vmatpush1.msra.mxu0 0.0
        %967 = vmatprep.subr.mxu0 0.0
        %968 = vmatpush1.msra.mxu0 0.0
        %969 = vmatprep.subr.mxu0 0.0
        %970 = vmatpush1.msra.mxu0 0.0
        %971 = vmatprep.subr.mxu0 0.0
        %972 = vmatpush1.msra.mxu0 0.0
        %973 = vmatprep.subr.mxu0 0.0
        %974 = vmatpush1.msra.mxu0 0.0
        %975 = vmatprep.subr.mxu0 0.0
        %976 = vmatpush1.msra.mxu0 0.0
        %977 = vmatprep.subr.mxu0 0.0
        %978 = vmatpush1.msra.mxu0 0.0
        %979 = vmatprep.subr.mxu0 0.0
        %980 = vmatpush1.msra.mxu0 0.0
        %981 = vmatprep.subr.mxu0 0.0
        %982 = vmatpush1.msra.mxu0 0.0
        %983 = vmatprep.subr.mxu0 0.0
        %984 = vmatpush1.msra.mxu0 0.0
        %985 = vmatprep.subr.mxu0 0.0
        %986 = vmatpush1.msra.mxu0 0.0
        %987 = vmatprep.subr.mxu0 0.0
        %988 = vmatpush1.msra.mxu0 0.0
        %989 = vmatprep.mubr.f32.mxu0 0.0
        %990 = vmatmul.mubr.f32.gmra.mrb[0].mxu0 %v923
        %v991 = vpop.f32.mrb[0].mxu0
        %v992 = vadd.f32 0.0, %v991
        %v993 = vpop.f32.mrb[0].mxu0
        %994 = vdwg.mxu0
        %v995 = vld [vmem:[#allocation11] sm:$0xff]
        %v996 = vld [vmem:[#allocation11 + $0x8] sm:$0xff]
        %v997 = vld [vmem:[#allocation11 + $0x10] sm:$0xff]
        %v998 = vld [vmem:[#allocation11 + $0x18] sm:$0xff]
        %v1000 = vsel %vm611, %v992, 0
        %1002 = vmatprep.subr.mxu0 0.0
        %1003 = vmatpush1.msra.mxu0 %v995
        %1004 = vmatprep.subr.mxu0 0.0
        %1005 = vmatpush1.msra.mxu0 %v996
        %1006 = vmatprep.subr.mxu0 0.0
        %1007 = vmatpush1.msra.mxu0 %v997
        %1008 = vmatprep.subr.mxu0 0.0
        %1009 = vmatpush1.msra.mxu0 %v998
        %1010 = vmatprep.subr.mxu0 0.0
        %1011 = vmatpush1.msra.mxu0 0.0
        %1012 = vmatprep.subr.mxu0 0.0
        %1013 = vmatpush1.msra.mxu0 0.0
        %1014 = vmatprep.subr.mxu0 0.0
        %1015 = vmatpush1.msra.mxu0 0.0
        %1016 = vmatprep.subr.mxu0 0.0
        %1017 = vmatpush1.msra.mxu0 0.0
        %1018 = vmatprep.subr.mxu0 0.0
        %1019 = vmatpush1.msra.mxu0 0.0
        %1020 = vmatprep.subr.mxu0 0.0
        %1021 = vmatpush1.msra.mxu0 0.0
        %1022 = vmatprep.subr.mxu0 0.0
        %1023 = vmatpush1.msra.mxu0 0.0
        %1024 = vmatprep.subr.mxu0 0.0
        %1025 = vmatpush1.msra.mxu0 0.0
        %1026 = vmatprep.subr.mxu0 0.0
        %1027 = vmatpush1.msra.mxu0 0.0
        %1028 = vmatprep.subr.mxu0 0.0
        %1029 = vmatpush1.msra.mxu0 0.0
        %1030 = vmatprep.subr.mxu0 0.0
        %1031 = vmatpush1.msra.mxu0 0.0
        %1032 = vmatprep.subr.mxu0 0.0
        %1033 = vmatpush1.msra.mxu0 0.0
        %1034 = vmatprep.subr.mxu0 0.0
        %1035 = vmatpush1.msra.mxu0 0.0
        %1036 = vmatprep.subr.mxu0 0.0
        %1037 = vmatpush1.msra.mxu0 0.0
        %1038 = vmatprep.subr.mxu0 0.0
        %1039 = vmatpush1.msra.mxu0 0.0
        %1040 = vmatprep.subr.mxu0 0.0
        %1041 = vmatpush1.msra.mxu0 0.0
        %1042 = vmatprep.subr.mxu0 0.0
        %1043 = vmatpush1.msra.mxu0 0.0
        %1044 = vmatprep.subr.mxu0 0.0
        %1045 = vmatpush1.msra.mxu0 0.0
        %1046 = vmatprep.subr.mxu0 0.0
        %1047 = vmatpush1.msra.mxu0 0.0
        %1048 = vmatprep.subr.mxu0 0.0
        %1049 = vmatpush1.msra.mxu0 0.0
        %1050 = vmatprep.subr.mxu0 0.0
        %1051 = vmatpush1.msra.mxu0 0.0
        %1052 = vmatprep.subr.mxu0 0.0
        %1053 = vmatpush1.msra.mxu0 0.0
        %1054 = vmatprep.subr.mxu0 0.0
        %1055 = vmatpush1.msra.mxu0 0.0
        %1056 = vmatprep.subr.mxu0 0.0
        %1057 = vmatpush1.msra.mxu0 0.0
        %1058 = vmatprep.subr.mxu0 0.0
        %1059 = vmatpush1.msra.mxu0 0.0
        %1060 = vmatprep.subr.mxu0 0.0
        %1061 = vmatpush1.msra.mxu0 0.0
        %1062 = vmatprep.subr.mxu0 0.0
        %1063 = vmatpush1.msra.mxu0 0.0
        %1064 = vmatprep.subr.mxu0 0.0
        %1065 = vmatpush1.msra.mxu0 0.0
        %1066 = vmatprep.mubr.f32.mxu0 0.0
        %1067 = vmatmul.mubr.f32.gmra.mrb[0].mxu0 %v1000
        %v1068 = vpop.f32.mrb[0].mxu0
        %v1069 = vadd.f32 %v606, %v1068
        %v1070 = vpop.f32.mrb[0].mxu0
        %1071 = vdwg.mxu0
        %v1072 = vld [vmem:[%s6] sm:$0x1]
        %v1073 = vld [vmem:[%s7] sm:$0x1]
        %v1074 = vsel %vm611, %v1069, 0.0
        %1075 = vadd.xlane.f32.xlu0 %v1074
        %v1076 = vpop.xlane.xlu0 %1075
        %v1077 = vrcp.pop 32.0
        %v1078 = vmul.f32 %v1076, %v1077
        %v1079 = vsub.f32 %v1069, %v1078
        %v1080 = vmul.f32 %v1079, %v1079
        %v1081 = vsel %vm611, %v1080, 0.0
        %1082 = vadd.xlane.f32.xlu0 %v1081
        %v1083 = vpop.xlane.xlu0 %1082
        %v1084 = vmul.f32 %v1083, %v1077
        %v1085 = vadd.f32 %v1084, 1e-06
        %v1086 = vrsqrt.pop %v1085
        %v1087 = vmul.f32 %v1079, %v1086
        %v1089 = vlaneseq
        %v1090 = vshrl.u32 %v1089, 7
        %v1091 = vsub.s32 0, %v1090
        %v1092 = vrot.slane %v1072, %v1091
        %v1094 = vmul.f32 %v1087, %v1092
        %v1096 = vlaneseq
        %v1097 = vshrl.u32 %v1096, 7
        %v1098 = vsub.s32 0, %v1097
        %v1099 = vrot.slane %v1073, %v1098
        %v1101 = vadd.f32 %v1094, %v1099
        %v1102 = vld [vmem:[#allocation13] sm:$0xff]
        %v1103 = vld [vmem:[#allocation13 + $0x8] sm:$0xff]
        %v1104 = vld [vmem:[#allocation13 + $0x10] sm:$0xff]
        %v1105 = vld [vmem:[#allocation13 + $0x18] sm:$0xff]
        %v1106 = vld [vmem:[%s9] sm:$0x1]
        %v1108 = vlaneseq
        %v1109 = vshrl.u32 %v1108, 7
        %v1110 = vsub.s32 0, %v1109
        %v1111 = vrot.slane %v1106, %v1110
        %v1114 = vsel %vm611, %v1101, 0
        %1116 = vmatprep.subr.mxu0 0.0
        %1117 = vmatpush1.msra.mxu0 %v1102
        %1118 = vmatprep.subr.mxu0 0.0
        %1119 = vmatpush1.msra.mxu0 %v1103
        %1120 = vmatprep.subr.mxu0 0.0
        %1121 = vmatpush1.msra.mxu0 %v1104
        %1122 = vmatprep.subr.mxu0 0.0
        %1123 = vmatpush1.msra.mxu0 %v1105
        %1124 = vmatprep.subr.mxu0 0.0
        %1125 = vmatpush1.msra.mxu0 0.0
        %1126 = vmatprep.subr.mxu0 0.0
        %1127 = vmatpush1.msra.mxu0 0.0
        %1128 = vmatprep.subr.mxu0 0.0
        %1129 = vmatpush1.msra.mxu0 0.0
        %1130 = vmatprep.subr.mxu0 0.0
        %1131 = vmatpush1.msra.mxu0 0.0
        %1132 = vmatprep.subr.mxu0 0.0
        %1133 = vmatpush1.msra.mxu0 0.0
        %1134 = vmatprep.subr.mxu0 0.0
        %1135 = vmatpush1.msra.mxu0 0.0
        %1136 = vmatprep.subr.mxu0 0.0
        %1137 = vmatpush1.msra.mxu0 0.0
        %1138 = vmatprep.subr.mxu0 0.0
        %1139 = vmatpush1.msra.mxu0 0.0
        %1140 = vmatprep.subr.mxu0 0.0
        %1141 = vmatpush1.msra.mxu0 0.0
        %1142 = vmatprep.subr.mxu0 0.0
        %1143 = vmatpush1.msra.mxu0 0.0
        %1144 = vmatprep.subr.mxu0 0.0
        %1145 = vmatpush1.msra.mxu0 0.0
        %1146 = vmatprep.subr.mxu0 0.0
        %1147 = vmatpush1.msra.mxu0 0.0
        %1148 = vmatprep.subr.mxu0 0.0
        %1149 = vmatpush1.msra.mxu0 0.0
        %1150 = vmatprep.subr.mxu0 0.0
        %1151 = vmatpush1.msra.mxu0 0.0
        %1152 = vmatprep.subr.mxu0 0.0
        %1153 = vmatpush1.msra.mxu0 0.0
        %1154 = vmatprep.subr.mxu0 0.0
        %1155 = vmatpush1.msra.mxu0 0.0
        %1156 = vmatprep.subr.mxu0 0.0
        %1157 = vmatpush1.msra.mxu0 0.0
        %1158 = vmatprep.subr.mxu0 0.0
        %1159 = vmatpush1.msra.mxu0 0.0
        %1160 = vmatprep.subr.mxu0 0.0
        %1161 = vmatpush1.msra.mxu0 0.0
        %1162 = vmatprep.subr.mxu0 0.0
        %1163 = vmatpush1.msra.mxu0 0.0
        %1164 = vmatprep.subr.mxu0 0.0
        %1165 = vmatpush1.msra.mxu0 0.0
        %1166 = vmatprep.subr.mxu0 0.0
        %1167 = vmatpush1.msra.mxu0 0.0
        %1168 = vmatprep.subr.mxu0 0.0
        %1169 = vmatpush1.msra.mxu0 0.0
        %1170 = vmatprep.subr.mxu0 0.0
        %1171 = vmatpush1.msra.mxu0 0.0
        %1172 = vmatprep.subr.mxu0 0.0
        %1173 = vmatpush1.msra.mxu0 0.0
        %1174 = vmatprep.subr.mxu0 0.0
        %1175 = vmatpush1.msra.mxu0 0.0
        %1176 = vmatprep.subr.mxu0 0.0
        %1177 = vmatpush1.msra.mxu0 0.0
        %1178 = vmatprep.subr.mxu0 0.0
        %1179 = vmatpush1.msra.mxu0 0.0
        %1180 = vmatprep.mubr.f32.mxu0 0.0
        %1181 = vmatmul.mubr.f32.gmra.mrb[0].mxu0 %v1114
        %v1182 = vpop.f32.mrb[0].mxu0
        %v1183 = vadd.f32 %v1111, %v1182
        %v1184 = vpop.f32.mrb[0].mxu0
        %1185 = vdwg.mxu0
        %v1186 = vmax.f32 %v1183, 0.0
        %v1187 = vld [vmem:[%s10] sm:$0xff]
        %v1188 = vld [vmem:[%s10 + $0x8] sm:$0xff]
        %v1189 = vld [vmem:[%s10 + $0x10] sm:$0xff]
        %v1190 = vld [vmem:[%s10 + $0x18] sm:$0xff]
        %v1191 = vld [vmem:[%s11] sm:$0x1]
        %v1193 = vlaneseq
        %v1194 = vshrl.u32 %v1193, 7
        %v1195 = vsub.s32 0, %v1194
        %v1196 = vrot.slane %v1191, %v1195
        %v1199 = vsel %vm611, %v1186, 0
        %1201 = vmatprep.subr.mxu0 0.0
        %1202 = vmatpush1.msra.mxu0 %v1187
        %1203 = vmatprep.subr.mxu0 0.0
        %1204 = vmatpush1.msra.mxu0 %v1188
        %1205 = vmatprep.subr.mxu0 0.0
        %1206 = vmatpush1.msra.mxu0 %v1189
        %1207 = vmatprep.subr.mxu0 0.0
        %1208 = vmatpush1.msra.mxu0 %v1190
        %1209 = vmatprep.subr.mxu0 0.0
        %1210 = vmatpush1.msra.mxu0 0.0
        %1211 = vmatprep.subr.mxu0 0.0
        %1212 = vmatpush1.msra.mxu0 0.0
        %1213 = vmatprep.subr.mxu0 0.0
        %1214 = vmatpush1.msra.mxu0 0.0
        %1215 = vmatprep.subr.mxu0 0.0
        %1216 = vmatpush1.msra.mxu0 0.0
        %1217 = vmatprep.subr.mxu0 0.0
        %1218 = vmatpush1.msra.mxu0 0.0
        %1219 = vmatprep.subr.mxu0 0.0
        %1220 = vmatpush1.msra.mxu0 0.0
        %1221 = vmatprep.subr.mxu0 0.0
        %1222 = vmatpush1.msra.mxu0 0.0
        %1223 = vmatprep.subr.mxu0 0.0
        %1224 = vmatpush1.msra.mxu0 0.0
        %1225 = vmatprep.subr.mxu0 0.0
        %1226 = vmatpush1.msra.mxu0 0.0
        %1227 = vmatprep.subr.mxu0 0.0
        %1228 = vmatpush1.msra.mxu0 0.0
        %1229 = vmatprep.subr.mxu0 0.0
        %1230 = vmatpush1.msra.mxu0 0.0
        %1231 = vmatprep.subr.mxu0 0.0
        %1232 = vmatpush1.msra.mxu0 0.0
        %1233 = vmatprep.subr.mxu0 0.0
        %1234 = vmatpush1.msra.mxu0 0.0
        %1235 = vmatprep.subr.mxu0 0.0
        %1236 = vmatpush1.msra.mxu0 0.0
        %1237 = vmatprep.subr.mxu0 0.0
        %1238 = vmatpush1.msra.mxu0 0.0
        %1239 = vmatprep.subr.mxu0 0.0
        %1240 = vmatpush1.msra.mxu0 0.0
        %1241 = vmatprep.subr.mxu0 0.0
        %1242 = vmatpush1.msra.mxu0 0.0
        %1243 = vmatprep.subr.mxu0 0.0
        %1244 = vmatpush1.msra.mxu0 0.0
        %1245 = vmatprep.subr.mxu0 0.0
        %1246 = vmatpush1.msra.mxu0 0.0
        %1247 = vmatprep.subr.mxu0 0.0
        %1248 = vmatpush1.msra.mxu0 0.0
        %1249 = vmatprep.subr.mxu0 0.0
        %1250 = vmatpush1.msra.mxu0 0.0
        %1251 = vmatprep.subr.mxu0 0.0
        %1252 = vmatpush1.msra.mxu0 0.0
        %1253 = vmatprep.subr.mxu0 0.0
        %1254 = vmatpush1.msra.mxu0 0.0
        %1255 = vmatprep.subr.mxu0 0.0
        %1256 = vmatpush1.msra.mxu0 0.0
        %1257 = vmatprep.subr.mxu0 0.0
        %1258 = vmatpush1.msra.mxu0 0.0
        %1259 = vmatprep.subr.mxu0 0.0
        %1260 = vmatpush1.msra.mxu0 0.0
        %1261 = vmatprep.subr.mxu0 0.0
        %1262 = vmatpush1.msra.mxu0 0.0
        %1263 = vmatprep.subr.mxu0 0.0
        %1264 = vmatpush1.msra.mxu0 0.0
        %1265 = vmatprep.mubr.f32.mxu0 0.0
        %1266 = vmatmul.mubr.f32.gmra.mrb[0].mxu0 %v1199
        %v1267 = vpop.f32.mrb[0].mxu0
        %v1268 = vadd.f32 %v1196, %v1267
        %v1269 = vpop.f32.mrb[0].mxu0
        %1270 = vdwg.mxu0
        %v1271 = vadd.f32 %v1268, %v1101
        %v1272 = vld [vmem:[%s12] sm:$0x1]
        %v1273 = vld [vmem:[%s13] sm:$0x1]
        %v1274 = vsel %vm611, %v1271, 0.0
        %1275 = vadd.xlane.f32.xlu0 %v1274
        %v1276 = vpop.xlane.xlu0 %1275
        %v1277 = vmul.f32 %v1276, %v1077
        %v1278 = vsub.f32 %v1271, %v1277
        %v1279 = vmul.f32 %v1278, %v1278
        %v1280 = vsel %vm611, %v1279, 0.0
        %1281 = vadd.xlane.f32.xlu0 %v1280
        %v1282 = vpop.xlane.xlu0 %1281
        %v1283 = vmul.f32 %v1282, %v1077
        %v1284 = vadd.f32 %v1283, 1e-06
        %v1285 = vrsqrt.pop %v1284
        %v1286 = vmul.f32 %v1278, %v1285
        %v1288 = vlaneseq
        %v1289 = vshrl.u32 %v1288, 7
        %v1290 = vsub.s32 0, %v1289
        %v1291 = vrot.slane %v1272, %v1290
        %v1293 = vmul.f32 %v1286, %v1291
        %v1295 = vlaneseq
        %v1296 = vshrl.u32 %v1295, 7
        %v1297 = vsub.s32 0, %v1296
        %v1298 = vrot.slane %v1273, %v1297
        %v1300 = vadd.f32 %v1293, %v1298
        %1301 = vst.msk [vmem:[%s598] sm:$0xff] %vm611, %v1300
        %1302 = vst.msk [vmem:[%s605] sm:$0xff] %vm910, %v921
        %s1303 = sand.u32 %s346, 1
        %s1304 = scalar_lea.sflag [#allocation4], %s1303
        %s1305 = sand.u32 %s346, 1
        %s1306 = smul.addr %s1305, 8
        %s1307 = scalar_lea.vmem [#allocation14], %s1306
        %s1308 = sand.u32 %s372, 1
        %s1309 = scalar_lea.sflag [#allocation16], %s1308
        %s1310 = sand.u32 %s372, 1
        %s1311 = smul.addr %s1310, 8
        %s1312 = scalar_lea.vmem [#allocation15], %s1311
        // Predicated region
        $region105: #{tpu_custom_call.1} parent=75 // pred_check
          %p1313 = pneg %p356
        $region106: #{tpu_custom_call.1} parent=75 // pred_check_branch
          %1315 = sbr.rel (%p1313) target = $region108
        $region107: #{tpu_custom_call.1} parent=75 // pred_region
          %s1317 = ssub.s32 128, 128
          %1318 = vsyncadd %s1304, %s1317
          %s1319 = smul.addr %s39, 128
          %s1320 = scalar_lea.hbm %s14, %s1319
          %s1322 = sshll.u32 %s1307, 4
          %s1323 = int_to_ptr.vmem [resolvable:$true] %s1322
          %1325 = dma.vmem_to_hbm [thread:$0]  %s1323, 128, %s1320, %s1304
        $region108: #{tpu_custom_call.1} parent=75 // pred_fallthru
          _
        // Predicated region
        $region109: #{tpu_custom_call.1} parent=75 // pred_check
          %p1326 = pneg %p382
        $region110: #{tpu_custom_call.1} parent=75 // pred_check_branch
          %1328 = sbr.rel (%p1326) target = $region112
        $region111: #{tpu_custom_call.1} parent=75 // pred_region
          %s1330 = ssub.s32 128, 128
          %1331 = vsyncadd %s1309, %s1330
          %s1332 = smul.addr %s39, 128
          %s1333 = scalar_lea.hbm %s15, %s1332
          %s1335 = sshll.u32 %s1312, 4
          %s1336 = int_to_ptr.vmem [resolvable:$true] %s1335
          %1338 = dma.vmem_to_hbm [thread:$0]  %s1336, 128, %s1333, %s1309
        $region112: #{tpu_custom_call.1} parent=75 // pred_fallthru
          _
      $region76: #{tpu_custom_call.1} parent=5 // pred_fallthru
        _
      %p1339 = scmp.le.s32.totalorder 2, %s34
      // Predicated region
      $region113: #{tpu_custom_call.1} parent=5 // pred_check
        %p1340 = pneg %p1339
      $region114: #{tpu_custom_call.1} parent=5 // pred_check_branch
        %1342 = sbr.rel (%p1340) target = $region116
      $region115: #{tpu_custom_call.1} parent=5 // pred_region
        %s1343 = ssub.s32 %s34, 2
        // Predicated region
        $region117: #{tpu_custom_call.1} parent=115 // pred_check
          %p1344 = pneg %p362
        $region118: #{tpu_custom_call.1} parent=115 // pred_check_branch
          %1346 = sbr.rel (%p1344) target = $region120
        $region119: #{tpu_custom_call.1} parent=115 // pred_region
          %s1347 = sand.u32 %s347, 1
          %s1348 = scalar_lea.sflag [#allocation4], %s1347
          %s1349 = sand.u32 %s347, 1
          %s1350 = smul.addr %s1349, 8
          %s1351 = scalar_lea.vmem [#allocation14], %s1350
          %1352 = dma.done %s1348, 128
        $region120: #{tpu_custom_call.1} parent=115 // pred_fallthru
          _
        // Predicated region
        $region121: #{tpu_custom_call.1} parent=115 // pred_check
          %p1353 = pneg %p388
        $region122: #{tpu_custom_call.1} parent=115 // pred_check_branch
          %1355 = sbr.rel (%p1353) target = $region124
        $region123: #{tpu_custom_call.1} parent=115 // pred_region
          %s1356 = sand.u32 %s373, 1
          %s1357 = scalar_lea.sflag [#allocation16], %s1356
          %s1358 = sand.u32 %s373, 1
          %s1359 = smul.addr %s1358, 8
          %s1360 = scalar_lea.vmem [#allocation15], %s1359
          %1361 = dma.done %s1357, 128
        $region124: #{tpu_custom_call.1} parent=115 // pred_fallthru
          _
      $region116: #{tpu_custom_call.1} parent=5 // pred_fallthru
        _
    $region6: #{tpu_custom_call.1} parent=1 // loop_footer
      %s38 = sadd.s32 1, %s34
    $region7: #{tpu_custom_call.1} parent=1 // loop_footer_branch
      %33 = sbr.rel target = $region3
    $region8: #{tpu_custom_call.1} parent=1 // loop_exit
      _
    %1362 = vsyncpa [#allocation3], 1
    %s1363 = scalar_lea.sflag [#allocation3], 1
    %1364 = vsyncpa %s1363, 1
    %1365 = vsyncpa [#allocation6], 1
    %1366 = vsyncpa [#allocation9], 1
    %1367 = vsyncpa [#allocation12], 1
    %1368 = vsyncpa [#allocation4], 1
    %s1369 = scalar_lea.sflag [#allocation4], 1
    %1370 = vsyncpa %s1369, 1
    %1371 = vsyncpa [#allocation16], 1
    %s1372 = scalar_lea.sflag [#allocation16], 1
    %1373 = vsyncpa %s1372, 1

</llo_original>
